<compile_context>
chip_gen: v6e
topology: v6e:2x2x1
jax: 0.10.0
libtpu: 0.0.40
codegen_flags: <defaults>
</compile_context>

<pallas_src>
import functools

import jax
import jax.numpy as jnp
import numpy as np
from jax import lax
from jax.experimental import pallas as pl
from jax.experimental.pallas import tpu as pltpu

MARGIN = 0.5
CENTER_WEIGHT = 0.1
TRIPLET_WEIGHT = 0.3


def _make_kernel(total_b, tile_b, has_triplet):
    """Build the kernel body. total_b / tile_b / has_triplet are static."""

    def kernel(labels_ref, e1_ref, e2_ref, *rest):
        if has_triplet:
            a_ref, n_ref, c_ref, out_ref, acc_ref = rest
        else:
            c_ref, out_ref, acc_ref = rest

        step = pl.program_id(0)
        n_steps = pl.num_programs(0)

        @pl.when(step == 0)
        def _init():
            acc_ref[0] = 0.0
            acc_ref[1] = 0.0
            acc_ref[2] = 0.0

        e1 = e1_ref[...].astype(jnp.float32)          # (TB, D)
        e2 = e2_ref[...].astype(jnp.float32)          # (TB, D)
        lab = labels_ref[...].astype(jnp.float32)     # (TB, 1)
        c = c_ref[...].astype(jnp.float32)            # (2, D)

        # Valid-row mask (ragged last tile); padded rows may hold garbage, so
        # every per-row contribution goes through jnp.where before the reduce.
        rows_left = total_b - step * tile_b
        row_ids = lax.broadcasted_iota(jnp.int32, (tile_b, 1), 0)
        mask = row_ids < rows_left                    # (TB, 1) bool
        labm = jnp.where(mask, lab, 0.0)

        # Row squared norms (shared by contrastive + center).
        sq1 = jnp.sum(e1 * e1, axis=1, keepdims=True)  # (TB, 1)
        sq2 = jnp.sum(e2 * e2, axis=1, keepdims=True)  # (TB, 1)

        # --- ContrastiveLoss (fused F.normalize + cosine_similarity) ---
        # For any nonzero embedding this equals normalize-then-cosine exactly
        # (den == 1); rsqrt goes to the EUP slot instead of VALU divides.
        inv1 = lax.rsqrt(jnp.maximum(sq1, 1e-24))      # == 1/max(|e1|, 1e-12)
        inv2 = lax.rsqrt(jnp.maximum(sq2, 1e-24))
        sim = jnp.sum(e1 * e2, axis=1, keepdims=True) * inv1 * inv2
        closs = (labm * (1.0 - sim) ** 2 +
                 (1.0 - labm) * jnp.maximum(sim - MARGIN, 0.0) ** 2)
        acc_ref[0] += jnp.sum(jnp.where(mask, closs, 0.0))

        # --- CenterLoss via MXU: ||e - c_sel||^2 = ||e||^2 - 2 e.c_sel + ||c_sel||^2 ---
        dn = (((1,), (1,)), ((), ()))                  # contract D of both operands
        d1 = lax.dot_general(e1, c, dn, precision=lax.Precision.HIGHEST,
                             preferred_element_type=jnp.float32)   # (TB, 2)
        d2 = lax.dot_general(e2, c, dn, precision=lax.Precision.HIGHEST,
                             preferred_element_type=jnp.float32)   # (TB, 2)
        csq = jnp.sum(c * c, axis=1, keepdims=True)    # (2, 1)
        c0sq, c1sq = csq[0:1, :], csq[1:2, :]          # (1, 1) each
        # Labels are {0,1} -> select center row without a gather.
        csel_sq = (1.0 - labm) * c0sq + labm * c1sq    # (TB, 1)
        dsel1 = (1.0 - labm) * d1[:, 0:1] + labm * d1[:, 1:2]
        dsel2 = (1.0 - labm) * d2[:, 0:1] + labm * d2[:, 1:2]
        crow = (sq1 - 2.0 * dsel1 + csel_sq) + (sq2 - 2.0 * dsel2 + csel_sq)
        acc_ref[1] += jnp.sum(jnp.where(mask, crow, 0.0))

        # --- TripletLoss (anchor=anchor_emb, positive=emb1, negative=neg_emb) ---
        if has_triplet:
            a = a_ref[...].astype(jnp.float32)
            ng = n_ref[...].astype(jnp.float32)
            dpos = jnp.sum((a - e1) ** 2, axis=1, keepdims=True)
            dneg = jnp.sum((a - ng) ** 2, axis=1, keepdims=True)
            trow = jnp.maximum(dpos - dneg + MARGIN, 0.0)
            acc_ref[2] += jnp.sum(jnp.where(mask, trow, 0.0))

        # --- Finalize: apply 1/B and weights, compute weighted total in-kernel ---
        @pl.when(step == n_steps - 1)
        def _finalize():
            inv_b = 1.0 / total_b
            contrastive = acc_ref[0] * inv_b
            center = CENTER_WEIGHT * (acc_ref[1] * inv_b)
            out_ref[0] = contrastive
            out_ref[1] = center
            if has_triplet:
                trip = TRIPLET_WEIGHT * (acc_ref[2] * inv_b)
                out_ref[2] = trip
                out_ref[3] = contrastive + center + trip
            else:
                out_ref[2] = 0.0
                out_ref[3] = contrastive + center

    return kernel


def _pick_tile_rows(batch, dim, n_streamed):
    """Largest 8-multiple tile with double-buffered streamed inputs <= ~24 MiB
    (v7x-safe; on v5e/v6e the same cap leaves ample VMEM headroom)."""
    budget = 24 * 1024 * 1024
    cap = max(8, (budget // (n_streamed * 2 * dim * 4)) // 8 * 8)
    padded_b = ((batch + 7) // 8) * 8
    return max(8, min(cap, 1024, padded_b))


def combined_loss(emb1, emb2, labels, centers, anchor_emb=None, neg_emb=None,
                  tile_rows=None):
    """Returns (total_loss, losses_dict) matching CombinedLoss.forward."""
    B, D = emb1.shape
    has_triplet = anchor_emb is not None and neg_emb is not None
    labels_f = labels.astype(jnp.float32).reshape(B, 1)

    n_streamed = 4 if has_triplet else 2
    if tile_rows is None:
        tile_rows = _pick_tile_rows(B, D, n_streamed)
    tb = int(tile_rows)
    assert tb % 8 == 0, "tile_rows must be a multiple of 8"
    n_steps = pl.cdiv(B, tb)

    row_spec = pl.BlockSpec((tb, D), lambda i: (i, 0))
    lab_spec = pl.BlockSpec((tb, 1), lambda i: (i, 0))
    ctr_spec = pl.BlockSpec((2, D), lambda i: (0, 0))   # resident across the grid

    in_specs = [lab_spec, row_spec, row_spec]
    args = [labels_f, emb1, emb2]
    if has_triplet:
        in_specs += [row_spec, row_spec]
        args += [anchor_emb, neg_emb]
    in_specs.append(ctr_spec)
    args.append(centers)

    out = pl.pallas_call(
        _make_kernel(B, tb, has_triplet),
        out_shape=jax.ShapeDtypeStruct((4,), jnp.float32),
        grid_spec=pltpu.PrefetchScalarGridSpec(
            num_scalar_prefetch=0,
            grid=(n_steps,),
            in_specs=in_specs,
            out_specs=pl.BlockSpec(memory_space=pltpu.MemorySpace.SMEM),
            scratch_shapes=[pltpu.SMEM((3,), jnp.float32)],
        ),
        compiler_params=pltpu.CompilerParams(
            dimension_semantics=("arbitrary",)),
    )(*args)

    losses = {"contrastive": out[0], "center": out[1]}
    if has_triplet:
        losses["triplet"] = out[2]
    total = out[3]  # weighted total computed in-kernel
    return total, losses


def _reference(emb1, emb2, labels, centers, anchor=None, neg=None):
    """Pure-JAX reference mirroring the PyTorch module."""
    lab = labels.astype(jnp.float32)
    n1 = emb1 / jnp.maximum(jnp.linalg.norm(emb1, axis=1, keepdims=True), 1e-12)
    n2 = emb2 / jnp.maximum(jnp.linalg.norm(emb2, axis=1, keepdims=True), 1e-12)
    sim = jnp.sum(n1 * n2, axis=1) / jnp.maximum(
        jnp.linalg.norm(n1, axis=1) * jnp.linalg.norm(n2, axis=1), 1e-8)
    contrastive = jnp.mean(lab * (1 - sim) ** 2 +
                           (1 - lab) * jnp.maximum(sim - MARGIN, 0.0) ** 2)
    csel = centers[labels]
    center = CENTER_WEIGHT * ((jnp.sum((emb1 - csel) ** 2) +
                               jnp.sum((emb2 - csel) ** 2)) / emb1.shape[0])
    total = contrastive + center
    if anchor is not None and neg is not None:
        dpos = jnp.sum((anchor - emb1) ** 2, axis=1)
        dneg = jnp.sum((anchor - neg) ** 2, axis=1)
        total = total + TRIPLET_WEIGHT * jnp.mean(
            jnp.maximum(dpos - dneg + MARGIN, 0.0))
    return total


if __name__ == "__main__":
    key = jax.random.PRNGKey(0)
    k1, k2, k3, k4, k5, k6, k7 = jax.random.split(key, 7)

    B, D = 8, 128
    emb1 = jax.random.normal(k1, (B, D), dtype=jnp.float32)
    emb2 = jax.random.normal(k2, (B, D), dtype=jnp.float32)
    anchor = jax.random.normal(k3, (B, D), dtype=jnp.float32)
    neg = jax.random.normal(k4, (B, D), dtype=jnp.float32)
    labels = jax.random.bernoulli(k5, 0.5, (B,)).astype(jnp.int32)
    # CenterLoss lazily creates centers = randn(2, D); initialize deterministically here.
    centers = jax.random.normal(k6, (2, D), dtype=jnp.float32)

    # 1) Full path (contrastive + center + triplet), single tile.
    total, losses = combined_loss(emb1, emb2, labels, centers,
                                  anchor_emb=anchor, neg_emb=neg)
    total = jax.block_until_ready(total)
    ref_total = _reference(emb1, emb2, labels, centers, anchor, neg)
    np.testing.assert_allclose(np.asarray(total), np.asarray(ref_total),
                               rtol=1e-4, atol=1e-4)

    # 2) Multi-step accumulation + ragged last tile (B=20, TB=8 -> 3 grid steps).
    B2 = 20
    e1b = jax.random.normal(k7, (B2, D), dtype=jnp.float32)
    e2b = jax.random.normal(k1, (B2, D), dtype=jnp.float32)
    anb = jax.random.normal(k2, (B2, D), dtype=jnp.float32)
    ngb = jax.random.normal(k3, (B2, D), dtype=jnp.float32)
    labb = jax.random.bernoulli(k4, 0.5, (B2,)).astype(jnp.int32)
    total2, _ = combined_loss(e1b, e2b, labb, centers,
                              anchor_emb=anb, neg_emb=ngb, tile_rows=8)
    total2 = jax.block_until_ready(total2)
    ref2 = _reference(e1b, e2b, labb, centers, anb, ngb)
    np.testing.assert_allclose(np.asarray(total2), np.asarray(ref2),
                               rtol=1e-4, atol=1e-4)

    # 3) No-triplet path: dedicated kernel variant, no dummy anchor/neg DMA.
    total3, losses3 = combined_loss(emb1, emb2, labels, centers)
    total3 = jax.block_until_ready(total3)
    ref3 = _reference(emb1, emb2, labels, centers)
    np.testing.assert_allclose(np.asarray(total3), np.asarray(ref3),
                               rtol=1e-4, atol=1e-4)
    assert "triplet" not in losses3 and "triplet" in losses

    print("KERNEL_OK")
</pallas_src>

<mosaic_0001>
module attributes {stable_mosaic.version = 11 : i64} {
  func.func @kernel(%arg0: i32, %arg1: memref<8x1xf32, #tpu.memory_space<vmem>>, %arg2: memref<8x128xf32, #tpu.memory_space<vmem>>, %arg3: memref<8x128xf32, #tpu.memory_space<vmem>>, %arg4: memref<8x128xf32, #tpu.memory_space<vmem>>, %arg5: memref<8x128xf32, #tpu.memory_space<vmem>>, %arg6: memref<2x128xf32, #tpu.memory_space<vmem>>, %arg7: memref<4xf32, #tpu.memory_space<smem>>, %arg8: memref<3xf32, #tpu.memory_space<smem>>) attributes {dimension_semantics = [#tpu.dimension_semantics<arbitrary>], iteration_bounds = array<i64: 1>, scalar_prefetch = 0 : i64, scratch_operands = 1 : i64, tpu.core_type = #tpu.core_type<tc>, window_params = [{transform_indices = @transform_0, window_bounds = array<i64: 8, 1>}, {transform_indices = @transform_1, window_bounds = array<i64: 8, 128>}, {transform_indices = @transform_2, window_bounds = array<i64: 8, 128>}, {transform_indices = @transform_3, window_bounds = array<i64: 8, 128>}, {transform_indices = @transform_4, window_bounds = array<i64: 8, 128>}, {pipeline_mode = #tpu.pipeline_mode<synchronous>, transform_indices = @transform_5, window_bounds = array<i64: 2, 128>}, {transform_indices = @transform_6, window_bounds = array<i64: 4>}]} {
    %c0_i32 = arith.constant 0 : i32
    %0 = arith.cmpi eq, %arg0, %c0_i32 : i32
    %1 = arith.extui %0 : i1 to i32
    %c0_i32_0 = arith.constant 0 : i32
    %2 = arith.cmpi ne, %1, %c0_i32_0 : i32
    scf.if %2 {
      %cst_46 = arith.constant 0.000000e+00 : f32
      %c0_47 = arith.constant 0 : index
      %126 = memref.load %arg8[%c0_47] : memref<3xf32, #tpu.memory_space<smem>>
      memref.store %cst_46, %arg8[%c0_47] : memref<3xf32, #tpu.memory_space<smem>>
      %cst_48 = arith.constant 0.000000e+00 : f32
      %c1_49 = arith.constant 1 : index
      %127 = memref.load %arg8[%c1_49] : memref<3xf32, #tpu.memory_space<smem>>
      memref.store %cst_48, %arg8[%c1_49] : memref<3xf32, #tpu.memory_space<smem>>
      %cst_50 = arith.constant 0.000000e+00 : f32
      %c2_51 = arith.constant 2 : index
      %128 = memref.load %arg8[%c2_51] : memref<3xf32, #tpu.memory_space<smem>>
      memref.store %cst_50, %arg8[%c2_51] : memref<3xf32, #tpu.memory_space<smem>>
    } else {
    }
    %c0 = arith.constant 0 : index
    %c0_1 = arith.constant 0 : index
    %3 = vector.load %arg2[%c0, %c0_1] : memref<8x128xf32, #tpu.memory_space<vmem>>, vector<8x128xf32>
    %c0_2 = arith.constant 0 : index
    %c0_3 = arith.constant 0 : index
    %4 = vector.load %arg3[%c0_2, %c0_3] : memref<8x128xf32, #tpu.memory_space<vmem>>, vector<8x128xf32>
    %c0_4 = arith.constant 0 : index
    %c0_5 = arith.constant 0 : index
    %5 = vector.load %arg1[%c0_4, %c0_5] : memref<8x1xf32, #tpu.memory_space<vmem>>, vector<8x1xf32>
    %c0_6 = arith.constant 0 : index
    %c0_7 = arith.constant 0 : index
    %6 = vector.load %arg6[%c0_6, %c0_7] : memref<2x128xf32, #tpu.memory_space<vmem>>, vector<2x128xf32>
    %c8_i32 = arith.constant 8 : i32
    %7 = arith.muli %arg0, %c8_i32 : i32
    %c8_i32_8 = arith.constant 8 : i32
    %8 = arith.subi %c8_i32_8, %7 : i32
    %9 = tpu.iota {dimensions = array<i32: 0>} : vector<8x1xi32>
    %10 = vector.broadcast %8 : i32 to vector<8x1xi32>
    %11 = arith.cmpi slt, %9, %10 : vector<8x1xi32>
    %cst = arith.constant 0.000000e+00 : f32
    %12 = vector.broadcast %cst : f32 to vector<8x1xf32>
    %13 = arith.select %11, %5, %12 : vector<8x1xi1>, vector<8x1xf32>
    %14 = arith.mulf %3, %3 : vector<8x128xf32>
    %cst_9 = arith.constant dense<0.000000e+00> : vector<8xf32>
    %15 = vector.multi_reduction <add>, %14, %cst_9 [1] : vector<8x128xf32> to vector<8xf32>
    %16 = vector.shape_cast %15 : vector<8xf32> to vector<8x1xf32>
    %17 = arith.mulf %4, %4 : vector<8x128xf32>
    %cst_10 = arith.constant dense<0.000000e+00> : vector<8xf32>
    %18 = vector.multi_reduction <add>, %17, %cst_10 [1] : vector<8x128xf32> to vector<8xf32>
    %19 = vector.shape_cast %18 : vector<8xf32> to vector<8x1xf32>
    %cst_11 = arith.constant 1.000000e-24 : f32
    %20 = vector.broadcast %cst_11 : f32 to vector<8x1xf32>
    %21 = arith.maximumf %16, %20 : vector<8x1xf32>
    %22 = math.rsqrt %21 : vector<8x1xf32>
    %cst_12 = arith.constant 1.000000e-24 : f32
    %23 = vector.broadcast %cst_12 : f32 to vector<8x1xf32>
    %24 = arith.maximumf %19, %23 : vector<8x1xf32>
    %25 = math.rsqrt %24 : vector<8x1xf32>
    %26 = arith.mulf %3, %4 : vector<8x128xf32>
    %cst_13 = arith.constant dense<0.000000e+00> : vector<8xf32>
    %27 = vector.multi_reduction <add>, %26, %cst_13 [1] : vector<8x128xf32> to vector<8xf32>
    %28 = vector.shape_cast %27 : vector<8xf32> to vector<8x1xf32>
    %29 = arith.mulf %28, %22 : vector<8x1xf32>
    %30 = arith.mulf %29, %25 : vector<8x1xf32>
    %cst_14 = arith.constant 1.000000e+00 : f32
    %31 = vector.broadcast %cst_14 : f32 to vector<8x1xf32>
    %32 = arith.subf %31, %30 : vector<8x1xf32>
    %33 = arith.mulf %32, %32 : vector<8x1xf32>
    %34 = arith.mulf %13, %33 : vector<8x1xf32>
    %cst_15 = arith.constant 1.000000e+00 : f32
    %35 = vector.broadcast %cst_15 : f32 to vector<8x1xf32>
    %36 = arith.subf %35, %13 : vector<8x1xf32>
    %cst_16 = arith.constant 5.000000e-01 : f32
    %37 = vector.broadcast %cst_16 : f32 to vector<8x1xf32>
    %38 = arith.subf %30, %37 : vector<8x1xf32>
    %cst_17 = arith.constant 0.000000e+00 : f32
    %39 = vector.broadcast %cst_17 : f32 to vector<8x1xf32>
    %40 = arith.maximumf %38, %39 : vector<8x1xf32>
    %41 = arith.mulf %40, %40 : vector<8x1xf32>
    %42 = arith.mulf %36, %41 : vector<8x1xf32>
    %43 = arith.addf %34, %42 : vector<8x1xf32>
    %c0_18 = arith.constant 0 : index
    %44 = memref.load %arg8[%c0_18] : memref<3xf32, #tpu.memory_space<smem>>
    %cst_19 = arith.constant 0.000000e+00 : f32
    %45 = vector.broadcast %cst_19 : f32 to vector<8x1xf32>
    %46 = arith.select %11, %43, %45 : vector<8x1xi1>, vector<8x1xf32>
    %47 = vector.shape_cast %46 : vector<8x1xf32> to vector<1x8x1xf32>
    %cst_20 = arith.constant dense<0.000000e+00> : vector<1xf32>
    %48 = vector.multi_reduction <add>, %47, %cst_20 [1, 2] : vector<1x8x1xf32> to vector<1xf32>
    %49 = vector.shape_cast %48 : vector<1xf32> to vector<1x1x1xf32>
    %50 = vector.extract %49[0, 0, 0] : f32 from vector<1x1x1xf32>
    %51 = arith.addf %44, %50 : f32
    %c0_21 = arith.constant 0 : index
    %52 = memref.load %arg8[%c0_21] : memref<3xf32, #tpu.memory_space<smem>>
    memref.store %51, %arg8[%c0_21] : memref<3xf32, #tpu.memory_space<smem>>
    %cst_22 = arith.constant dense<0.000000e+00> : vector<8x2xf32>
    %53 = tpu.matmul %3, %6, %cst_22 {dimension_numbers = #tpu.dot_dimension_numbers<[1], [1], [0], [0], [0, 0, 1, 0], [], []>, precision = #tpu.contract_precision<fp32>} : vector<8x128xf32>, vector<2x128xf32>, vector<8x2xf32> -> vector<8x2xf32>
    %cst_23 = arith.constant dense<0.000000e+00> : vector<8x2xf32>
    %54 = tpu.matmul %4, %6, %cst_23 {dimension_numbers = #tpu.dot_dimension_numbers<[1], [1], [0], [0], [0, 0, 1, 0], [], []>, precision = #tpu.contract_precision<fp32>} : vector<8x128xf32>, vector<2x128xf32>, vector<8x2xf32> -> vector<8x2xf32>
    %55 = arith.mulf %6, %6 : vector<2x128xf32>
    %cst_24 = arith.constant dense<0.000000e+00> : vector<2xf32>
    %56 = vector.multi_reduction <add>, %55, %cst_24 [1] : vector<2x128xf32> to vector<2xf32>
    %57 = vector.shape_cast %56 : vector<2xf32> to vector<2x1xf32>
    %58 = vector.extract_strided_slice %57 {offsets = [0, 0], sizes = [1, 1], strides = [1, 1]} : vector<2x1xf32> to vector<1x1xf32>
    %59 = vector.extract_strided_slice %57 {offsets = [1, 0], sizes = [1, 1], strides = [1, 1]} : vector<2x1xf32> to vector<1x1xf32>
    %cst_25 = arith.constant 1.000000e+00 : f32
    %60 = vector.broadcast %cst_25 : f32 to vector<8x1xf32>
    %61 = arith.subf %60, %13 : vector<8x1xf32>
    %62 = vector.broadcast %58 : vector<1x1xf32> to vector<8x1xf32>
    %63 = arith.mulf %61, %62 : vector<8x1xf32>
    %64 = vector.broadcast %59 : vector<1x1xf32> to vector<8x1xf32>
    %65 = arith.mulf %13, %64 : vector<8x1xf32>
    %66 = arith.addf %63, %65 : vector<8x1xf32>
    %cst_26 = arith.constant 1.000000e+00 : f32
    %67 = vector.broadcast %cst_26 : f32 to vector<8x1xf32>
    %68 = arith.subf %67, %13 : vector<8x1xf32>
    %69 = vector.extract_strided_slice %53 {offsets = [0, 0], sizes = [8, 1], strides = [1, 1]} : vector<8x2xf32> to vector<8x1xf32>
    %70 = arith.mulf %68, %69 : vector<8x1xf32>
    %71 = vector.extract_strided_slice %53 {offsets = [0, 1], sizes = [8, 1], strides = [1, 1]} : vector<8x2xf32> to vector<8x1xf32>
    %72 = arith.mulf %13, %71 : vector<8x1xf32>
    %73 = arith.addf %70, %72 : vector<8x1xf32>
    %cst_27 = arith.constant 1.000000e+00 : f32
    %74 = vector.broadcast %cst_27 : f32 to vector<8x1xf32>
    %75 = arith.subf %74, %13 : vector<8x1xf32>
    %76 = vector.extract_strided_slice %54 {offsets = [0, 0], sizes = [8, 1], strides = [1, 1]} : vector<8x2xf32> to vector<8x1xf32>
    %77 = arith.mulf %75, %76 : vector<8x1xf32>
    %78 = vector.extract_strided_slice %54 {offsets = [0, 1], sizes = [8, 1], strides = [1, 1]} : vector<8x2xf32> to vector<8x1xf32>
    %79 = arith.mulf %13, %78 : vector<8x1xf32>
    %80 = arith.addf %77, %79 : vector<8x1xf32>
    %cst_28 = arith.constant 2.000000e+00 : f32
    %81 = vector.broadcast %cst_28 : f32 to vector<8x1xf32>
    %82 = arith.mulf %81, %73 : vector<8x1xf32>
    %83 = arith.subf %16, %82 : vector<8x1xf32>
    %84 = arith.addf %83, %66 : vector<8x1xf32>
    %cst_29 = arith.constant 2.000000e+00 : f32
    %85 = vector.broadcast %cst_29 : f32 to vector<8x1xf32>
    %86 = arith.mulf %85, %80 : vector<8x1xf32>
    %87 = arith.subf %19, %86 : vector<8x1xf32>
    %88 = arith.addf %87, %66 : vector<8x1xf32>
    %89 = arith.addf %84, %88 : vector<8x1xf32>
    %c1 = arith.constant 1 : index
    %90 = memref.load %arg8[%c1] : memref<3xf32, #tpu.memory_space<smem>>
    %cst_30 = arith.constant 0.000000e+00 : f32
    %91 = vector.broadcast %cst_30 : f32 to vector<8x1xf32>
    %92 = arith.select %11, %89, %91 : vector<8x1xi1>, vector<8x1xf32>
    %93 = vector.shape_cast %92 : vector<8x1xf32> to vector<1x8x1xf32>
    %cst_31 = arith.constant dense<0.000000e+00> : vector<1xf32>
    %94 = vector.multi_reduction <add>, %93, %cst_31 [1, 2] : vector<1x8x1xf32> to vector<1xf32>
    %95 = vector.shape_cast %94 : vector<1xf32> to vector<1x1x1xf32>
    %96 = vector.extract %95[0, 0, 0] : f32 from vector<1x1x1xf32>
    %97 = arith.addf %90, %96 : f32
    %c1_32 = arith.constant 1 : index
    %98 = memref.load %arg8[%c1_32] : memref<3xf32, #tpu.memory_space<smem>>
    memref.store %97, %arg8[%c1_32] : memref<3xf32, #tpu.memory_space<smem>>
    %c0_33 = arith.constant 0 : index
    %c0_34 = arith.constant 0 : index
    %99 = vector.load %arg4[%c0_33, %c0_34] : memref<8x128xf32, #tpu.memory_space<vmem>>, vector<8x128xf32>
    %c0_35 = arith.constant 0 : index
    %c0_36 = arith.constant 0 : index
    %100 = vector.load %arg5[%c0_35, %c0_36] : memref<8x128xf32, #tpu.memory_space<vmem>>, vector<8x128xf32>
    %101 = arith.subf %99, %3 : vector<8x128xf32>
    %102 = arith.mulf %101, %101 : vector<8x128xf32>
    %cst_37 = arith.constant dense<0.000000e+00> : vector<8xf32>
    %103 = vector.multi_reduction <add>, %102, %cst_37 [1] : vector<8x128xf32> to vector<8xf32>
    %104 = vector.shape_cast %103 : vector<8xf32> to vector<8x1xf32>
    %105 = arith.subf %99, %100 : vector<8x128xf32>
    %106 = arith.mulf %105, %105 : vector<8x128xf32>
    %cst_38 = arith.constant dense<0.000000e+00> : vector<8xf32>
    %107 = vector.multi_reduction <add>, %106, %cst_38 [1] : vector<8x128xf32> to vector<8xf32>
    %108 = vector.shape_cast %107 : vector<8xf32> to vector<8x1xf32>
    %109 = arith.subf %104, %108 : vector<8x1xf32>
    %cst_39 = arith.constant 5.000000e-01 : f32
    %110 = vector.broadcast %cst_39 : f32 to vector<8x1xf32>
    %111 = arith.addf %109, %110 : vector<8x1xf32>
    %cst_40 = arith.constant 0.000000e+00 : f32
    %112 = vector.broadcast %cst_40 : f32 to vector<8x1xf32>
    %113 = arith.maximumf %111, %112 : vector<8x1xf32>
    %c2 = arith.constant 2 : index
    %114 = memref.load %arg8[%c2] : memref<3xf32, #tpu.memory_space<smem>>
    %cst_41 = arith.constant 0.000000e+00 : f32
    %115 = vector.broadcast %cst_41 : f32 to vector<8x1xf32>
    %116 = arith.select %11, %113, %115 : vector<8x1xi1>, vector<8x1xf32>
    %117 = vector.shape_cast %116 : vector<8x1xf32> to vector<1x8x1xf32>
    %cst_42 = arith.constant dense<0.000000e+00> : vector<1xf32>
    %118 = vector.multi_reduction <add>, %117, %cst_42 [1, 2] : vector<1x8x1xf32> to vector<1xf32>
    %119 = vector.shape_cast %118 : vector<1xf32> to vector<1x1x1xf32>
    %120 = vector.extract %119[0, 0, 0] : f32 from vector<1x1x1xf32>
    %121 = arith.addf %114, %120 : f32
    %c2_43 = arith.constant 2 : index
    %122 = memref.load %arg8[%c2_43] : memref<3xf32, #tpu.memory_space<smem>>
    memref.store %121, %arg8[%c2_43] : memref<3xf32, #tpu.memory_space<smem>>
    %c0_i32_44 = arith.constant 0 : i32
    %123 = arith.cmpi eq, %arg0, %c0_i32_44 : i32
    %124 = arith.extui %123 : i1 to i32
    %c0_i32_45 = arith.constant 0 : i32
    %125 = arith.cmpi ne, %124, %c0_i32_45 : i32
    scf.if %125 {
      %c0_46 = arith.constant 0 : index
      %126 = memref.load %arg8[%c0_46] : memref<3xf32, #tpu.memory_space<smem>>
      %cst_47 = arith.constant 1.250000e-01 : f32
      %127 = arith.mulf %126, %cst_47 : f32
      %c1_48 = arith.constant 1 : index
      %128 = memref.load %arg8[%c1_48] : memref<3xf32, #tpu.memory_space<smem>>
      %cst_49 = arith.constant 1.250000e-01 : f32
      %129 = arith.mulf %128, %cst_49 : f32
      %cst_50 = arith.constant 1.000000e-01 : f32
      %130 = arith.mulf %cst_50, %129 : f32
      %c0_51 = arith.constant 0 : index
      %131 = memref.load %arg7[%c0_51] : memref<4xf32, #tpu.memory_space<smem>>
      memref.store %127, %arg7[%c0_51] : memref<4xf32, #tpu.memory_space<smem>>
      %c1_52 = arith.constant 1 : index
      %132 = memref.load %arg7[%c1_52] : memref<4xf32, #tpu.memory_space<smem>>
      memref.store %130, %arg7[%c1_52] : memref<4xf32, #tpu.memory_space<smem>>
      %c2_53 = arith.constant 2 : index
      %133 = memref.load %arg8[%c2_53] : memref<3xf32, #tpu.memory_space<smem>>
      %cst_54 = arith.constant 1.250000e-01 : f32
      %134 = arith.mulf %133, %cst_54 : f32
      %cst_55 = arith.constant 3.000000e-01 : f32
      %135 = arith.mulf %cst_55, %134 : f32
      %c2_56 = arith.constant 2 : index
      %136 = memref.load %arg7[%c2_56] : memref<4xf32, #tpu.memory_space<smem>>
      memref.store %135, %arg7[%c2_56] : memref<4xf32, #tpu.memory_space<smem>>
      %137 = arith.addf %127, %130 : f32
      %138 = arith.addf %137, %135 : f32
      %c3 = arith.constant 3 : index
      %139 = memref.load %arg7[%c3] : memref<4xf32, #tpu.memory_space<smem>>
      memref.store %138, %arg7[%c3] : memref<4xf32, #tpu.memory_space<smem>>
    } else {
    }
    return
  }
  func.func @transform_0(%arg0: i32) -> (i32, i32) {
    %c0_i32 = arith.constant 0 : i32
    %c0_i32_0 = arith.constant 0 : i32
    return %arg0, %c0_i32 : i32, i32
  }
  func.func @transform_1(%arg0: i32) -> (i32, i32) {
    %c0_i32 = arith.constant 0 : i32
    %c0_i32_0 = arith.constant 0 : i32
    return %arg0, %c0_i32 : i32, i32
  }
  func.func @transform_2(%arg0: i32) -> (i32, i32) {
    %c0_i32 = arith.constant 0 : i32
    %c0_i32_0 = arith.constant 0 : i32
    return %arg0, %c0_i32 : i32, i32
  }
  func.func @transform_3(%arg0: i32) -> (i32, i32) {
    %c0_i32 = arith.constant 0 : i32
    %c0_i32_0 = arith.constant 0 : i32
    return %arg0, %c0_i32 : i32, i32
  }
  func.func @transform_4(%arg0: i32) -> (i32, i32) {
    %c0_i32 = arith.constant 0 : i32
    %c0_i32_0 = arith.constant 0 : i32
    return %arg0, %c0_i32 : i32, i32
  }
  func.func @transform_5(%arg0: i32) -> (i32, i32) {
    %c0_i32 = arith.constant 0 : i32
    %c0_i32_0 = arith.constant 0 : i32
    %c0_i32_1 = arith.constant 0 : i32
    return %c0_i32, %c0_i32_0 : i32, i32
  }
  func.func @transform_6(%arg0: i32) -> i32 {
    %c0_i32 = arith.constant 0 : i32
    %c0_i32_0 = arith.constant 0 : i32
    return %c0_i32 : i32
  }
}

</mosaic_0001>

<llo_original>
// kernel: tpu_custom_call.1
$region0: #{tpu_custom_call.1}
  #allocation0 [shape = 'u32[]', space=smem, size = 0x4, offset = 0x4, fixed_abs, tag = 'smem constant byte address 0x4 - core index']
  #allocation1 [shape = 'u32[144,128]{1,0:T(1,128)}', space=vmem, size = 0x12000, scoped, tag = 'internal scratch']
  #allocation2 [shape = 'f32[3]{0:T(128)}', space=smem, size = 0x200, scoped, tag = 'scratch operand']
  %s0 = inlined_call_operand.vmem [shape: f32[8,1], index: 0, kind: input, shape index: {}]
  %s1 = inlined_call_operand.vmem [shape: f32[8,128], index: 1, kind: input, shape index: {}]
  %s2 = inlined_call_operand.hbm [shape: f32[8,128], index: 2, kind: input, shape index: {}]
  %s3 = inlined_call_operand.hbm [shape: f32[8,128], index: 3, kind: input, shape index: {}]
  %s4 = inlined_call_operand.vmem [shape: f32[8,128], index: 4, kind: input, shape index: {}]
  %s5 = inlined_call_operand.vmem [shape: f32[2,128], index: 5, kind: input, shape index: {}]
  %s6 = inlined_call_operand.hbm [shape: f32[4], index: 6, kind: output, shape index: {}]
  %s7 = sld [smem:[#allocation0]]
  $region50: #{tpu_custom_call.1} parent=0
    _
  %s9 = ssub.s32 1, %s7
  %s10 = scalar_select 0, %s9, %s7
  $region1: #{tpu_custom_call.1} parent=0
    #allocation3 [shape = 'u8[4096]{0}', space=vmem, size = 0x1000, scoped, tag = 'input window, operand 2, single buffered']
    #allocation4 [shape = 's32[1]{0}', space=sflag, size = 0x4, scoped, tag = 'scoped memory for tpu_custom_call.1']
    #allocation5 [shape = 's32[1]{0}', space=sflag, size = 0x4, scoped, tag = 'scoped memory for tpu_custom_call.1']
    #allocation6 [shape = 'u8[4096]{0}', space=vmem, size = 0x1000, scoped, tag = 'input window, operand 3, single buffered']
    #allocation7 [shape = 's32[1]{0}', space=sflag, size = 0x4, scoped, tag = 'scoped memory for tpu_custom_call.1']
    #allocation8 [shape = 'u8[512]{0}', space=smem, size = 0x200, scoped, tag = 'output window, operand 0, single buffered']
    %11 = vsyncpa [#allocation4], 0
    %12 = vsyncpa [#allocation7], 0
    %13 = vsyncpa [#allocation5], 0
    // Predicated region
    $region2: #{tpu_custom_call.1} parent=1 // pred_check
      _
    $region3: #{tpu_custom_call.1} parent=1 // pred_check_branch
      %15 = sbr.rel (0) target = $region5
    $region4: #{tpu_custom_call.1} parent=1 // pred_region
      _
    $region5: #{tpu_custom_call.1} parent=1 // pred_fallthru
      _
    // Predicated region
    $region6: #{tpu_custom_call.1} parent=1 // pred_check
      _
    $region7: #{tpu_custom_call.1} parent=1 // pred_check_branch
      %17 = sbr.rel (0) target = $region9
    $region8: #{tpu_custom_call.1} parent=1 // pred_region
      _
    $region9: #{tpu_custom_call.1} parent=1 // pred_fallthru
      _
    // Predicated region
    $region10: #{tpu_custom_call.1} parent=1 // pred_check
      _
    $region11: #{tpu_custom_call.1} parent=1 // pred_check_branch
      %19 = sbr.rel (0) target = $region13
    $region12: #{tpu_custom_call.1} parent=1 // pred_region
      %s21 = ssub.s32 128, 128
      %22 = vsyncadd [#allocation4], %s21
      %s24 = sshll.u32 [#allocation3], 4
      %s25 = int_to_ptr.vmem [resolvable:$true] %s24
      %27 = dma.hbm_to_vmem [thread:$0]  %s2, 128, %s25, [#allocation4]
    $region13: #{tpu_custom_call.1} parent=1 // pred_fallthru
      _
    // Predicated region
    $region14: #{tpu_custom_call.1} parent=1 // pred_check
      _
    $region15: #{tpu_custom_call.1} parent=1 // pred_check_branch
      %29 = sbr.rel (0) target = $region17
    $region16: #{tpu_custom_call.1} parent=1 // pred_region
      %s31 = ssub.s32 128, 128
      %32 = vsyncadd [#allocation7], %s31
      %s34 = sshll.u32 [#allocation6], 4
      %s35 = int_to_ptr.vmem [resolvable:$true] %s34
      %37 = dma.hbm_to_vmem [thread:$0]  %s3, 128, %s35, [#allocation7]
    $region17: #{tpu_custom_call.1} parent=1 // pred_fallthru
      _
    // Predicated region
    $region18: #{tpu_custom_call.1} parent=1 // pred_check
      _
    $region19: #{tpu_custom_call.1} parent=1 // pred_check_branch
      %39 = sbr.rel (0) target = $region21
    $region20: #{tpu_custom_call.1} parent=1 // pred_region
      _
    $region21: #{tpu_custom_call.1} parent=1 // pred_fallthru
      _
    // Predicated region
    $region22: #{tpu_custom_call.1} parent=1 // pred_check
      _
    $region23: #{tpu_custom_call.1} parent=1 // pred_check_branch
      %41 = sbr.rel (0) target = $region25
    $region24: #{tpu_custom_call.1} parent=1 // pred_region
      _
    $region25: #{tpu_custom_call.1} parent=1 // pred_fallthru
      _
    // Predicated region
    $region26: #{tpu_custom_call.1} parent=1 // pred_check
      _
    $region27: #{tpu_custom_call.1} parent=1 // pred_check_branch
      %43 = sbr.rel (0) target = $region29
    $region28: #{tpu_custom_call.1} parent=1 // pred_region
      %44 = dma.done [#allocation4], 128
    $region29: #{tpu_custom_call.1} parent=1 // pred_fallthru
      _
    // Predicated region
    $region30: #{tpu_custom_call.1} parent=1 // pred_check
      _
    $region31: #{tpu_custom_call.1} parent=1 // pred_check_branch
      %46 = sbr.rel (0) target = $region33
    $region32: #{tpu_custom_call.1} parent=1 // pred_region
      %47 = dma.done [#allocation7], 128
    $region33: #{tpu_custom_call.1} parent=1 // pred_fallthru
      _
    %p48 = scmp.eq.s32.totalorder 0, 0
    // Predicated region
    $region34: #{tpu_custom_call.1} parent=1 // pred_check
      %p49 = pneg %p48
    $region35: #{tpu_custom_call.1} parent=1 // pred_check_branch
      %51 = sbr.rel (%p49) target = $region37
    $region36: #{tpu_custom_call.1} parent=1 // pred_region
      %s52 = scalar_lea.smem [#allocation2], 0
      %53 = sst [smem:[%s52]] 0.0
      %s54 = scalar_lea.smem [#allocation2], 1
      %55 = sst [smem:[%s54]] 0.0
      %s56 = scalar_lea.smem [#allocation2], 2
      %57 = sst [smem:[%s56]] 0.0
    $region37: #{tpu_custom_call.1} parent=1 // pred_fallthru
      _
    %v58 = vld [vmem:[%s1] sm:$0xff]
    %v59 = vld [vmem:[#allocation3] sm:$0xff]
    %v60 = vld [vmem:[%s0] sm:$0xff]
    %v61 = vld [vmem:[%s5] sm:$0x3]
    %s62 = smul.u32 0, 8
    %s63 = ssub.s32 8, %s62
    %v64 = vlaneseq
    %v65 = vshrl.u32 %v64, 7
    %v66 = vstv %s63
    %vm67 = vcmp.lt.s32.totalorder %v65, %v66
    %v68 = vsel %vm67, %v60, 0.0
    %v69 = vmul.f32 %v58, %v58
    %70 = vadd.xlane.f32.xlu0 %v69
    %v71 = vpop.xlane.xlu0 %70
    %v72 = vmul.f32 %v59, %v59
    %73 = vadd.xlane.f32.xlu0 %v72
    %v74 = vpop.xlane.xlu0 %73
    %v75 = vmax.f32 %v71, 1e-24
    %v76 = vrsqrt.pop %v75
    %v77 = vmax.f32 %v74, 1e-24
    %v78 = vrsqrt.pop %v77
    %v79 = vmul.f32 %v58, %v59
    %80 = vadd.xlane.f32.xlu0 %v79
    %v81 = vpop.xlane.xlu0 %80
    %v82 = vmul.f32 %v81, %v76
    %v83 = vmul.f32 %v82, %v78
    %v84 = vsub.f32 1.0, %v83
    %v85 = vmul.f32 %v84, %v84
    %v86 = vmul.f32 %v68, %v85
    %v87 = vsub.f32 1.0, %v68
    %v88 = vsub.f32 %v83, 0.5
    %v89 = vmax.f32 %v88, 0.0
    %v90 = vmul.f32 %v89, %v89
    %v91 = vmul.f32 %v87, %v90
    %v92 = vadd.f32 %v86, %v91
    %s93 = sld [smem:[#allocation2]]
    %v94 = vsel %vm67, %v92, 0.0
    %vm95 = vcmask 7168
    %v96 = vsel %vm95, %v94, 0.0
    %97 = vadd.xlane.f32.xlu0 %v96
    %v98 = vpop.xlane.xlu0 %97
    %v99 = vrot.slane %v98, 4
    %v100 = vadd.f32 %v98, %v99
    %v101 = vrot.slane %v100, 2
    %v102 = vadd.f32 %v100, %v101
    %v103 = vrot.slane %v102, 1
    %v104 = vadd.f32 %v102, %v103
    %s105 = vtos %v104
    %s106 = sadd.f32 %s93, %s105
    %s107 = scalar_lea.smem [#allocation2], 0
    %108 = sst [smem:[%s107]] %s106
    %109 = vmatprep.subr.mxu0 0.0
    %110 = vmatpush1.xpose.msra.mxu0 0.0
    %111 = vmatprep.subr.mxu0 0.0
    %112 = vmatpush1.xpose.msra.mxu0 0.0
    %113 = vmatprep.subr.mxu0 0.0
    %114 = vmatpush1.xpose.msra.mxu0 0.0
    %115 = vmatprep.subr.mxu0 0.0
    %116 = vmatpush1.xpose.msra.mxu0 0.0
    %117 = vmatprep.subr.mxu0 0.0
    %118 = vmatpush1.xpose.msra.mxu0 0.0
    %119 = vmatprep.subr.mxu0 0.0
    %120 = vmatpush1.xpose.msra.mxu0 0.0
    %121 = vmatprep.subr.mxu0 0.0
    %122 = vmatpush1.xpose.msra.mxu0 0.0
    %123 = vmatprep.subr.mxu0 0.0
    %124 = vmatpush1.xpose.msra.mxu0 0.0
    %125 = vmatprep.subr.mxu0 0.0
    %126 = vmatpush1.xpose.msra.mxu0 0.0
    %127 = vmatprep.subr.mxu0 0.0
    %128 = vmatpush1.xpose.msra.mxu0 0.0
    %129 = vmatprep.subr.mxu0 0.0
    %130 = vmatpush1.xpose.msra.mxu0 0.0
    %131 = vmatprep.subr.mxu0 0.0
    %132 = vmatpush1.xpose.msra.mxu0 0.0
    %133 = vmatprep.subr.mxu0 0.0
    %134 = vmatpush1.xpose.msra.mxu0 0.0
    %135 = vmatprep.subr.mxu0 0.0
    %136 = vmatpush1.xpose.msra.mxu0 0.0
    %137 = vmatprep.subr.mxu0 0.0
    %138 = vmatpush1.xpose.msra.mxu0 0.0
    %139 = vmatprep.subr.mxu0 0.0
    %v140 = vand.u32 %v61, 4294901760
    %141 = vmatpush1.xpose.msra.mxu0 %v140
    %142 = vmatprep.subr.mxu0 0.0
    %143 = vmatpush2.xpose.msra.mxu0 0.0
    %144 = vmatprep.subr.mxu0 0.0
    %145 = vmatpush2.xpose.msra.mxu0 0.0
    %146 = vmatprep.subr.mxu0 0.0
    %147 = vmatpush2.xpose.msra.mxu0 0.0
    %148 = vmatprep.subr.mxu0 0.0
    %149 = vmatpush2.xpose.msra.mxu0 0.0
    %150 = vmatprep.subr.mxu0 0.0
    %151 = vmatpush2.xpose.msra.mxu0 0.0
    %152 = vmatprep.subr.mxu0 0.0
    %153 = vmatpush2.xpose.msra.mxu0 0.0
    %154 = vmatprep.subr.mxu0 0.0
    %155 = vmatpush2.xpose.msra.mxu0 0.0
    %156 = vmatprep.subr.mxu0 0.0
    %157 = vmatpush2.xpose.msra.mxu0 0.0
    %158 = vmatprep.subr.mxu0 0.0
    %159 = vmatpush2.xpose.msra.mxu0 0.0
    %160 = vmatprep.subr.mxu0 0.0
    %161 = vmatpush2.xpose.msra.mxu0 0.0
    %162 = vmatprep.subr.mxu0 0.0
    %163 = vmatpush2.xpose.msra.mxu0 0.0
    %164 = vmatprep.subr.mxu0 0.0
    %165 = vmatpush2.xpose.msra.mxu0 0.0
    %166 = vmatprep.subr.mxu0 0.0
    %167 = vmatpush2.xpose.msra.mxu0 0.0
    %168 = vmatprep.subr.mxu0 0.0
    %169 = vmatpush2.xpose.msra.mxu0 0.0
    %170 = vmatprep.subr.mxu0 0.0
    %171 = vmatpush2.xpose.msra.mxu0 0.0
    %172 = vmatprep.subr.mxu0 0.0
    %173 = vmatpush2.xpose.msra.mxu0 0.0
    %174 = vmatprep.mubr.f32.mxu0 0.0
    %v175 = vand.u32 %v58, 4294901760
    %v176 = vsub.f32 %v58, %v175
    %v177 = vand.u32 %v176, 4294901760
    %v178 = vsub.f32 %v176, %v177
    %v179 = vand.u32 %v178, 4294901760
    %180 = vmatmul.mubr.f32.gmra.mxu0 %v179
    %v181 = vpop.f32.mrf.mxu0
    %v182 = vadd.f32 0.0, %v181
    %v183 = vpop.f32.mrf.mxu0
    %184 = vdwg.mxu0
    %185 = vmatprep.subr.mxu0 0.0
    %186 = vmatpush1.xpose.msra.mxu0 0.0
    %187 = vmatprep.subr.mxu0 0.0
    %188 = vmatpush1.xpose.msra.mxu0 0.0
    %189 = vmatprep.subr.mxu0 0.0
    %190 = vmatpush1.xpose.msra.mxu0 0.0
    %191 = vmatprep.subr.mxu0 0.0
    %192 = vmatpush1.xpose.msra.mxu0 0.0
    %193 = vmatprep.subr.mxu0 0.0
    %194 = vmatpush1.xpose.msra.mxu0 0.0
    %195 = vmatprep.subr.mxu0 0.0
    %196 = vmatpush1.xpose.msra.mxu0 0.0
    %197 = vmatprep.subr.mxu0 0.0
    %198 = vmatpush1.xpose.msra.mxu0 0.0
    %199 = vmatprep.subr.mxu0 0.0
    %200 = vmatpush1.xpose.msra.mxu0 0.0
    %201 = vmatprep.subr.mxu0 0.0
    %202 = vmatpush1.xpose.msra.mxu0 0.0
    %203 = vmatprep.subr.mxu0 0.0
    %204 = vmatpush1.xpose.msra.mxu0 0.0
    %205 = vmatprep.subr.mxu0 0.0
    %206 = vmatpush1.xpose.msra.mxu0 0.0
    %207 = vmatprep.subr.mxu0 0.0
    %208 = vmatpush1.xpose.msra.mxu0 0.0
    %209 = vmatprep.subr.mxu0 0.0
    %210 = vmatpush1.xpose.msra.mxu0 0.0
    %211 = vmatprep.subr.mxu0 0.0
    %212 = vmatpush1.xpose.msra.mxu0 0.0
    %213 = vmatprep.subr.mxu0 0.0
    %214 = vmatpush1.xpose.msra.mxu0 0.0
    %215 = vmatprep.subr.mxu0 0.0
    %v216 = vand.u32 %v61, 4294901760
    %v217 = vsub.f32 %v61, %v216
    %v218 = vand.u32 %v217, 4294901760
    %v219 = vsub.f32 %v217, %v218
    %v220 = vand.u32 %v219, 4294901760
    %221 = vmatpush1.xpose.msra.mxu0 %v220
    %222 = vmatprep.subr.mxu0 0.0
    %223 = vmatpush2.xpose.msra.mxu0 0.0
    %224 = vmatprep.subr.mxu0 0.0
    %225 = vmatpush2.xpose.msra.mxu0 0.0
    %226 = vmatprep.subr.mxu0 0.0
    %227 = vmatpush2.xpose.msra.mxu0 0.0
    %228 = vmatprep.subr.mxu0 0.0
    %229 = vmatpush2.xpose.msra.mxu0 0.0
    %230 = vmatprep.subr.mxu0 0.0
    %231 = vmatpush2.xpose.msra.mxu0 0.0
    %232 = vmatprep.subr.mxu0 0.0
    %233 = vmatpush2.xpose.msra.mxu0 0.0
    %234 = vmatprep.subr.mxu0 0.0
    %235 = vmatpush2.xpose.msra.mxu0 0.0
    %236 = vmatprep.subr.mxu0 0.0
    %237 = vmatpush2.xpose.msra.mxu0 0.0
    %238 = vmatprep.subr.mxu0 0.0
    %239 = vmatpush2.xpose.msra.mxu0 0.0
    %240 = vmatprep.subr.mxu0 0.0
    %241 = vmatpush2.xpose.msra.mxu0 0.0
    %242 = vmatprep.subr.mxu0 0.0
    %243 = vmatpush2.xpose.msra.mxu0 0.0
    %244 = vmatprep.subr.mxu0 0.0
    %245 = vmatpush2.xpose.msra.mxu0 0.0
    %246 = vmatprep.subr.mxu0 0.0
    %247 = vmatpush2.xpose.msra.mxu0 0.0
    %248 = vmatprep.subr.mxu0 0.0
    %249 = vmatpush2.xpose.msra.mxu0 0.0
    %250 = vmatprep.subr.mxu0 0.0
    %251 = vmatpush2.xpose.msra.mxu0 0.0
    %252 = vmatprep.subr.mxu0 0.0
    %253 = vmatpush2.xpose.msra.mxu0 0.0
    %254 = vmatprep.mubr.f32.mxu0 0.0
    %v255 = vand.u32 %v58, 4294901760
    %256 = vmatmul.mubr.f32.gmra.mxu0 %v255
    %v257 = vpop.f32.mrf.mxu0
    %v258 = vadd.f32 %v182, %v257
    %v259 = vpop.f32.mrf.mxu0
    %260 = vdwg.mxu0
    %261 = vmatprep.subr.mxu0 0.0
    %262 = vmatpush1.xpose.msra.mxu0 0.0
    %263 = vmatprep.subr.mxu0 0.0
    %264 = vmatpush1.xpose.msra.mxu0 0.0
    %265 = vmatprep.subr.mxu0 0.0
    %266 = vmatpush1.xpose.msra.mxu0 0.0
    %267 = vmatprep.subr.mxu0 0.0
    %268 = vmatpush1.xpose.msra.mxu0 0.0
    %269 = vmatprep.subr.mxu0 0.0
    %270 = vmatpush1.xpose.msra.mxu0 0.0
    %271 = vmatprep.subr.mxu0 0.0
    %272 = vmatpush1.xpose.msra.mxu0 0.0
    %273 = vmatprep.subr.mxu0 0.0
    %274 = vmatpush1.xpose.msra.mxu0 0.0
    %275 = vmatprep.subr.mxu0 0.0
    %276 = vmatpush1.xpose.msra.mxu0 0.0
    %277 = vmatprep.subr.mxu0 0.0
    %278 = vmatpush1.xpose.msra.mxu0 0.0
    %279 = vmatprep.subr.mxu0 0.0
    %280 = vmatpush1.xpose.msra.mxu0 0.0
    %281 = vmatprep.subr.mxu0 0.0
    %282 = vmatpush1.xpose.msra.mxu0 0.0
    %283 = vmatprep.subr.mxu0 0.0
    %284 = vmatpush1.xpose.msra.mxu0 0.0
    %285 = vmatprep.subr.mxu0 0.0
    %286 = vmatpush1.xpose.msra.mxu0 0.0
    %287 = vmatprep.subr.mxu0 0.0
    %288 = vmatpush1.xpose.msra.mxu0 0.0
    %289 = vmatprep.subr.mxu0 0.0
    %290 = vmatpush1.xpose.msra.mxu0 0.0
    %291 = vmatprep.subr.mxu0 0.0
    %v292 = vand.u32 %v61, 4294901760
    %v293 = vsub.f32 %v61, %v292
    %294 = vmatpush1.xpose.msra.mxu0 %v293
    %295 = vmatprep.subr.mxu0 0.0
    %296 = vmatpush2.xpose.msra.mxu0 0.0
    %297 = vmatprep.subr.mxu0 0.0
    %298 = vmatpush2.xpose.msra.mxu0 0.0
    %299 = vmatprep.subr.mxu0 0.0
    %300 = vmatpush2.xpose.msra.mxu0 0.0
    %301 = vmatprep.subr.mxu0 0.0
    %302 = vmatpush2.xpose.msra.mxu0 0.0
    %303 = vmatprep.subr.mxu0 0.0
    %304 = vmatpush2.xpose.msra.mxu0 0.0
    %305 = vmatprep.subr.mxu0 0.0
    %306 = vmatpush2.xpose.msra.mxu0 0.0
    %307 = vmatprep.subr.mxu0 0.0
    %308 = vmatpush2.xpose.msra.mxu0 0.0
    %309 = vmatprep.subr.mxu0 0.0
    %310 = vmatpush2.xpose.msra.mxu0 0.0
    %311 = vmatprep.subr.mxu0 0.0
    %312 = vmatpush2.xpose.msra.mxu0 0.0
    %313 = vmatprep.subr.mxu0 0.0
    %314 = vmatpush2.xpose.msra.mxu0 0.0
    %315 = vmatprep.subr.mxu0 0.0
    %316 = vmatpush2.xpose.msra.mxu0 0.0
    %317 = vmatprep.subr.mxu0 0.0
    %318 = vmatpush2.xpose.msra.mxu0 0.0
    %319 = vmatprep.subr.mxu0 0.0
    %320 = vmatpush2.xpose.msra.mxu0 0.0
    %321 = vmatprep.subr.mxu0 0.0
    %322 = vmatpush2.xpose.msra.mxu0 0.0
    %323 = vmatprep.subr.mxu0 0.0
    %324 = vmatpush2.xpose.msra.mxu0 0.0
    %325 = vmatprep.subr.mxu0 0.0
    %326 = vmatpush2.xpose.msra.mxu0 0.0
    %327 = vmatprep.mubr.f32.mxu0 0.0
    %v328 = vand.u32 %v58, 4294901760
    %v329 = vsub.f32 %v58, %v328
    %330 = vmatmul.mubr.f32.gmra.mxu0 %v329
    %v331 = vpop.f32.mrf.mxu0
    %v332 = vadd.f32 %v258, %v331
    %v333 = vpop.f32.mrf.mxu0
    %334 = vdwg.mxu0
    %335 = vmatprep.subr.mxu0 0.0
    %336 = vmatpush1.xpose.msra.mxu0 0.0
    %337 = vmatprep.subr.mxu0 0.0
    %338 = vmatpush1.xpose.msra.mxu0 0.0
    %339 = vmatprep.subr.mxu0 0.0
    %340 = vmatpush1.xpose.msra.mxu0 0.0
    %341 = vmatprep.subr.mxu0 0.0
    %342 = vmatpush1.xpose.msra.mxu0 0.0
    %343 = vmatprep.subr.mxu0 0.0
    %344 = vmatpush1.xpose.msra.mxu0 0.0
    %345 = vmatprep.subr.mxu0 0.0
    %346 = vmatpush1.xpose.msra.mxu0 0.0
    %347 = vmatprep.subr.mxu0 0.0
    %348 = vmatpush1.xpose.msra.mxu0 0.0
    %349 = vmatprep.subr.mxu0 0.0
    %350 = vmatpush1.xpose.msra.mxu0 0.0
    %351 = vmatprep.subr.mxu0 0.0
    %352 = vmatpush1.xpose.msra.mxu0 0.0
    %353 = vmatprep.subr.mxu0 0.0
    %354 = vmatpush1.xpose.msra.mxu0 0.0
    %355 = vmatprep.subr.mxu0 0.0
    %356 = vmatpush1.xpose.msra.mxu0 0.0
    %357 = vmatprep.subr.mxu0 0.0
    %358 = vmatpush1.xpose.msra.mxu0 0.0
    %359 = vmatprep.subr.mxu0 0.0
    %360 = vmatpush1.xpose.msra.mxu0 0.0
    %361 = vmatprep.subr.mxu0 0.0
    %362 = vmatpush1.xpose.msra.mxu0 0.0
    %363 = vmatprep.subr.mxu0 0.0
    %364 = vmatpush1.xpose.msra.mxu0 0.0
    %365 = vmatprep.subr.mxu0 0.0
    %v366 = vand.u32 %v61, 4294901760
    %367 = vmatpush1.xpose.msra.mxu0 %v366
    %368 = vmatprep.subr.mxu0 0.0
    %369 = vmatpush2.xpose.msra.mxu0 0.0
    %370 = vmatprep.subr.mxu0 0.0
    %371 = vmatpush2.xpose.msra.mxu0 0.0
    %372 = vmatprep.subr.mxu0 0.0
    %373 = vmatpush2.xpose.msra.mxu0 0.0
    %374 = vmatprep.subr.mxu0 0.0
    %375 = vmatpush2.xpose.msra.mxu0 0.0
    %376 = vmatprep.subr.mxu0 0.0
    %377 = vmatpush2.xpose.msra.mxu0 0.0
    %378 = vmatprep.subr.mxu0 0.0
    %379 = vmatpush2.xpose.msra.mxu0 0.0
    %380 = vmatprep.subr.mxu0 0.0
    %381 = vmatpush2.xpose.msra.mxu0 0.0
    %382 = vmatprep.subr.mxu0 0.0
    %383 = vmatpush2.xpose.msra.mxu0 0.0
    %384 = vmatprep.subr.mxu0 0.0
    %385 = vmatpush2.xpose.msra.mxu0 0.0
    %386 = vmatprep.subr.mxu0 0.0
    %387 = vmatpush2.xpose.msra.mxu0 0.0
    %388 = vmatprep.subr.mxu0 0.0
    %389 = vmatpush2.xpose.msra.mxu0 0.0
    %390 = vmatprep.subr.mxu0 0.0
    %391 = vmatpush2.xpose.msra.mxu0 0.0
    %392 = vmatprep.subr.mxu0 0.0
    %393 = vmatpush2.xpose.msra.mxu0 0.0
    %394 = vmatprep.subr.mxu0 0.0
    %395 = vmatpush2.xpose.msra.mxu0 0.0
    %396 = vmatprep.subr.mxu0 0.0
    %397 = vmatpush2.xpose.msra.mxu0 0.0
    %398 = vmatprep.subr.mxu0 0.0
    %399 = vmatpush2.xpose.msra.mxu0 0.0
    %400 = vmatprep.mubr.f32.mxu0 0.0
    %v401 = vand.u32 %v58, 4294901760
    %v402 = vsub.f32 %v58, %v401
    %v403 = vand.u32 %v402, 4294901760
    %404 = vmatmul.mubr.f32.gmra.mxu0 %v403
    %v405 = vpop.f32.mrf.mxu0
    %v406 = vadd.f32 %v332, %v405
    %v407 = vpop.f32.mrf.mxu0
    %408 = vdwg.mxu0
    %409 = vmatprep.subr.mxu0 0.0
    %410 = vmatpush1.xpose.msra.mxu0 0.0
    %411 = vmatprep.subr.mxu0 0.0
    %412 = vmatpush1.xpose.msra.mxu0 0.0
    %413 = vmatprep.subr.mxu0 0.0
    %414 = vmatpush1.xpose.msra.mxu0 0.0
    %415 = vmatprep.subr.mxu0 0.0
    %416 = vmatpush1.xpose.msra.mxu0 0.0
    %417 = vmatprep.subr.mxu0 0.0
    %418 = vmatpush1.xpose.msra.mxu0 0.0
    %419 = vmatprep.subr.mxu0 0.0
    %420 = vmatpush1.xpose.msra.mxu0 0.0
    %421 = vmatprep.subr.mxu0 0.0
    %422 = vmatpush1.xpose.msra.mxu0 0.0
    %423 = vmatprep.subr.mxu0 0.0
    %424 = vmatpush1.xpose.msra.mxu0 0.0
    %425 = vmatprep.subr.mxu0 0.0
    %426 = vmatpush1.xpose.msra.mxu0 0.0
    %427 = vmatprep.subr.mxu0 0.0
    %428 = vmatpush1.xpose.msra.mxu0 0.0
    %429 = vmatprep.subr.mxu0 0.0
    %430 = vmatpush1.xpose.msra.mxu0 0.0
    %431 = vmatprep.subr.mxu0 0.0
    %432 = vmatpush1.xpose.msra.mxu0 0.0
    %433 = vmatprep.subr.mxu0 0.0
    %434 = vmatpush1.xpose.msra.mxu0 0.0
    %435 = vmatprep.subr.mxu0 0.0
    %436 = vmatpush1.xpose.msra.mxu0 0.0
    %437 = vmatprep.subr.mxu0 0.0
    %438 = vmatpush1.xpose.msra.mxu0 0.0
    %439 = vmatprep.subr.mxu0 0.0
    %v440 = vand.u32 %v61, 4294901760
    %v441 = vsub.f32 %v61, %v440
    %v442 = vand.u32 %v441, 4294901760
    %443 = vmatpush1.xpose.msra.mxu0 %v442
    %444 = vmatprep.subr.mxu0 0.0
    %445 = vmatpush2.xpose.msra.mxu0 0.0
    %446 = vmatprep.subr.mxu0 0.0
    %447 = vmatpush2.xpose.msra.mxu0 0.0
    %448 = vmatprep.subr.mxu0 0.0
    %449 = vmatpush2.xpose.msra.mxu0 0.0
    %450 = vmatprep.subr.mxu0 0.0
    %451 = vmatpush2.xpose.msra.mxu0 0.0
    %452 = vmatprep.subr.mxu0 0.0
    %453 = vmatpush2.xpose.msra.mxu0 0.0
    %454 = vmatprep.subr.mxu0 0.0
    %455 = vmatpush2.xpose.msra.mxu0 0.0
    %456 = vmatprep.subr.mxu0 0.0
    %457 = vmatpush2.xpose.msra.mxu0 0.0
    %458 = vmatprep.subr.mxu0 0.0
    %459 = vmatpush2.xpose.msra.mxu0 0.0
    %460 = vmatprep.subr.mxu0 0.0
    %461 = vmatpush2.xpose.msra.mxu0 0.0
    %462 = vmatprep.subr.mxu0 0.0
    %463 = vmatpush2.xpose.msra.mxu0 0.0
    %464 = vmatprep.subr.mxu0 0.0
    %465 = vmatpush2.xpose.msra.mxu0 0.0
    %466 = vmatprep.subr.mxu0 0.0
    %467 = vmatpush2.xpose.msra.mxu0 0.0
    %468 = vmatprep.subr.mxu0 0.0
    %469 = vmatpush2.xpose.msra.mxu0 0.0
    %470 = vmatprep.subr.mxu0 0.0
    %471 = vmatpush2.xpose.msra.mxu0 0.0
    %472 = vmatprep.subr.mxu0 0.0
    %473 = vmatpush2.xpose.msra.mxu0 0.0
    %474 = vmatprep.subr.mxu0 0.0
    %475 = vmatpush2.xpose.msra.mxu0 0.0
    %476 = vmatprep.mubr.f32.mxu0 0.0
    %v477 = vand.u32 %v58, 4294901760
    %478 = vmatmul.mubr.f32.gmra.mxu0 %v477
    %v479 = vpop.f32.mrf.mxu0
    %v480 = vadd.f32 %v406, %v479
    %v481 = vpop.f32.mrf.mxu0
    %482 = vdwg.mxu0
    %483 = vmatprep.subr.mxu0 0.0
    %484 = vmatpush1.xpose.msra.mxu0 0.0
    %485 = vmatprep.subr.mxu0 0.0
    %486 = vmatpush1.xpose.msra.mxu0 0.0
    %487 = vmatprep.subr.mxu0 0.0
    %488 = vmatpush1.xpose.msra.mxu0 0.0
    %489 = vmatprep.subr.mxu0 0.0
    %490 = vmatpush1.xpose.msra.mxu0 0.0
    %491 = vmatprep.subr.mxu0 0.0
    %492 = vmatpush1.xpose.msra.mxu0 0.0
    %493 = vmatprep.subr.mxu0 0.0
    %494 = vmatpush1.xpose.msra.mxu0 0.0
    %495 = vmatprep.subr.mxu0 0.0
    %496 = vmatpush1.xpose.msra.mxu0 0.0
    %497 = vmatprep.subr.mxu0 0.0
    %498 = vmatpush1.xpose.msra.mxu0 0.0
    %499 = vmatprep.subr.mxu0 0.0
    %500 = vmatpush1.xpose.msra.mxu0 0.0
    %501 = vmatprep.subr.mxu0 0.0
    %502 = vmatpush1.xpose.msra.mxu0 0.0
    %503 = vmatprep.subr.mxu0 0.0
    %504 = vmatpush1.xpose.msra.mxu0 0.0
    %505 = vmatprep.subr.mxu0 0.0
    %506 = vmatpush1.xpose.msra.mxu0 0.0
    %507 = vmatprep.subr.mxu0 0.0
    %508 = vmatpush1.xpose.msra.mxu0 0.0
    %509 = vmatprep.subr.mxu0 0.0
    %510 = vmatpush1.xpose.msra.mxu0 0.0
    %511 = vmatprep.subr.mxu0 0.0
    %512 = vmatpush1.xpose.msra.mxu0 0.0
    %513 = vmatprep.subr.mxu0 0.0
    %v514 = vand.u32 %v61, 4294901760
    %515 = vmatpush1.xpose.msra.mxu0 %v514
    %516 = vmatprep.subr.mxu0 0.0
    %517 = vmatpush2.xpose.msra.mxu0 0.0
    %518 = vmatprep.subr.mxu0 0.0
    %519 = vmatpush2.xpose.msra.mxu0 0.0
    %520 = vmatprep.subr.mxu0 0.0
    %521 = vmatpush2.xpose.msra.mxu0 0.0
    %522 = vmatprep.subr.mxu0 0.0
    %523 = vmatpush2.xpose.msra.mxu0 0.0
    %524 = vmatprep.subr.mxu0 0.0
    %525 = vmatpush2.xpose.msra.mxu0 0.0
    %526 = vmatprep.subr.mxu0 0.0
    %527 = vmatpush2.xpose.msra.mxu0 0.0
    %528 = vmatprep.subr.mxu0 0.0
    %529 = vmatpush2.xpose.msra.mxu0 0.0
    %530 = vmatprep.subr.mxu0 0.0
    %531 = vmatpush2.xpose.msra.mxu0 0.0
    %532 = vmatprep.subr.mxu0 0.0
    %533 = vmatpush2.xpose.msra.mxu0 0.0
    %534 = vmatprep.subr.mxu0 0.0
    %535 = vmatpush2.xpose.msra.mxu0 0.0
    %536 = vmatprep.subr.mxu0 0.0
    %537 = vmatpush2.xpose.msra.mxu0 0.0
    %538 = vmatprep.subr.mxu0 0.0
    %539 = vmatpush2.xpose.msra.mxu0 0.0
    %540 = vmatprep.subr.mxu0 0.0
    %541 = vmatpush2.xpose.msra.mxu0 0.0
    %542 = vmatprep.subr.mxu0 0.0
    %543 = vmatpush2.xpose.msra.mxu0 0.0
    %544 = vmatprep.subr.mxu0 0.0
    %545 = vmatpush2.xpose.msra.mxu0 0.0
    %546 = vmatprep.subr.mxu0 0.0
    %547 = vmatpush2.xpose.msra.mxu0 0.0
    %548 = vmatprep.mubr.f32.mxu0 0.0
    %v549 = vand.u32 %v58, 4294901760
    %550 = vmatmul.mubr.f32.gmra.mxu0 %v549
    %v551 = vpop.f32.mrf.mxu0
    %v552 = vadd.f32 %v480, %v551
    %v553 = vpop.f32.mrf.mxu0
    %554 = vdwg.mxu0
    %555 = vmatprep.subr.mxu0 0.0
    %556 = vmatpush1.xpose.msra.mxu0 0.0
    %557 = vmatprep.subr.mxu0 0.0
    %558 = vmatpush1.xpose.msra.mxu0 0.0
    %559 = vmatprep.subr.mxu0 0.0
    %560 = vmatpush1.xpose.msra.mxu0 0.0
    %561 = vmatprep.subr.mxu0 0.0
    %562 = vmatpush1.xpose.msra.mxu0 0.0
    %563 = vmatprep.subr.mxu0 0.0
    %564 = vmatpush1.xpose.msra.mxu0 0.0
    %565 = vmatprep.subr.mxu0 0.0
    %566 = vmatpush1.xpose.msra.mxu0 0.0
    %567 = vmatprep.subr.mxu0 0.0
    %568 = vmatpush1.xpose.msra.mxu0 0.0
    %569 = vmatprep.subr.mxu0 0.0
    %570 = vmatpush1.xpose.msra.mxu0 0.0
    %571 = vmatprep.subr.mxu0 0.0
    %572 = vmatpush1.xpose.msra.mxu0 0.0
    %573 = vmatprep.subr.mxu0 0.0
    %574 = vmatpush1.xpose.msra.mxu0 0.0
    %575 = vmatprep.subr.mxu0 0.0
    %576 = vmatpush1.xpose.msra.mxu0 0.0
    %577 = vmatprep.subr.mxu0 0.0
    %578 = vmatpush1.xpose.msra.mxu0 0.0
    %579 = vmatprep.subr.mxu0 0.0
    %580 = vmatpush1.xpose.msra.mxu0 0.0
    %581 = vmatprep.subr.mxu0 0.0
    %582 = vmatpush1.xpose.msra.mxu0 0.0
    %583 = vmatprep.subr.mxu0 0.0
    %584 = vmatpush1.xpose.msra.mxu0 0.0
    %585 = vmatprep.subr.mxu0 0.0
    %v586 = vand.u32 %v61, 4294901760
    %587 = vmatpush1.xpose.msra.mxu0 %v586
    %588 = vmatprep.subr.mxu0 0.0
    %589 = vmatpush2.xpose.msra.mxu0 0.0
    %590 = vmatprep.subr.mxu0 0.0
    %591 = vmatpush2.xpose.msra.mxu0 0.0
    %592 = vmatprep.subr.mxu0 0.0
    %593 = vmatpush2.xpose.msra.mxu0 0.0
    %594 = vmatprep.subr.mxu0 0.0
    %595 = vmatpush2.xpose.msra.mxu0 0.0
    %596 = vmatprep.subr.mxu0 0.0
    %597 = vmatpush2.xpose.msra.mxu0 0.0
    %598 = vmatprep.subr.mxu0 0.0
    %599 = vmatpush2.xpose.msra.mxu0 0.0
    %600 = vmatprep.subr.mxu0 0.0
    %601 = vmatpush2.xpose.msra.mxu0 0.0
    %602 = vmatprep.subr.mxu0 0.0
    %603 = vmatpush2.xpose.msra.mxu0 0.0
    %604 = vmatprep.subr.mxu0 0.0
    %605 = vmatpush2.xpose.msra.mxu0 0.0
    %606 = vmatprep.subr.mxu0 0.0
    %607 = vmatpush2.xpose.msra.mxu0 0.0
    %608 = vmatprep.subr.mxu0 0.0
    %609 = vmatpush2.xpose.msra.mxu0 0.0
    %610 = vmatprep.subr.mxu0 0.0
    %611 = vmatpush2.xpose.msra.mxu0 0.0
    %612 = vmatprep.subr.mxu0 0.0
    %613 = vmatpush2.xpose.msra.mxu0 0.0
    %614 = vmatprep.subr.mxu0 0.0
    %615 = vmatpush2.xpose.msra.mxu0 0.0
    %616 = vmatprep.subr.mxu0 0.0
    %617 = vmatpush2.xpose.msra.mxu0 0.0
    %618 = vmatprep.subr.mxu0 0.0
    %619 = vmatpush2.xpose.msra.mxu0 0.0
    %620 = vmatprep.mubr.f32.mxu0 0.0
    %v621 = vand.u32 %v59, 4294901760
    %v622 = vsub.f32 %v59, %v621
    %v623 = vand.u32 %v622, 4294901760
    %v624 = vsub.f32 %v622, %v623
    %v625 = vand.u32 %v624, 4294901760
    %626 = vmatmul.mubr.f32.gmra.mxu0 %v625
    %v627 = vpop.f32.mrf.mxu0
    %v628 = vadd.f32 0.0, %v627
    %v629 = vpop.f32.mrf.mxu0
    %630 = vdwg.mxu0
    %631 = vmatprep.subr.mxu0 0.0
    %632 = vmatpush1.xpose.msra.mxu0 0.0
    %633 = vmatprep.subr.mxu0 0.0
    %634 = vmatpush1.xpose.msra.mxu0 0.0
    %635 = vmatprep.subr.mxu0 0.0
    %636 = vmatpush1.xpose.msra.mxu0 0.0
    %637 = vmatprep.subr.mxu0 0.0
    %638 = vmatpush1.xpose.msra.mxu0 0.0
    %639 = vmatprep.subr.mxu0 0.0
    %640 = vmatpush1.xpose.msra.mxu0 0.0
    %641 = vmatprep.subr.mxu0 0.0
    %642 = vmatpush1.xpose.msra.mxu0 0.0
    %643 = vmatprep.subr.mxu0 0.0
    %644 = vmatpush1.xpose.msra.mxu0 0.0
    %645 = vmatprep.subr.mxu0 0.0
    %646 = vmatpush1.xpose.msra.mxu0 0.0
    %647 = vmatprep.subr.mxu0 0.0
    %648 = vmatpush1.xpose.msra.mxu0 0.0
    %649 = vmatprep.subr.mxu0 0.0
    %650 = vmatpush1.xpose.msra.mxu0 0.0
    %651 = vmatprep.subr.mxu0 0.0
    %652 = vmatpush1.xpose.msra.mxu0 0.0
    %653 = vmatprep.subr.mxu0 0.0
    %654 = vmatpush1.xpose.msra.mxu0 0.0
    %655 = vmatprep.subr.mxu0 0.0
    %656 = vmatpush1.xpose.msra.mxu0 0.0
    %657 = vmatprep.subr.mxu0 0.0
    %658 = vmatpush1.xpose.msra.mxu0 0.0
    %659 = vmatprep.subr.mxu0 0.0
    %660 = vmatpush1.xpose.msra.mxu0 0.0
    %661 = vmatprep.subr.mxu0 0.0
    %v662 = vand.u32 %v61, 4294901760
    %v663 = vsub.f32 %v61, %v662
    %v664 = vand.u32 %v663, 4294901760
    %v665 = vsub.f32 %v663, %v664
    %v666 = vand.u32 %v665, 4294901760
    %667 = vmatpush1.xpose.msra.mxu0 %v666
    %668 = vmatprep.subr.mxu0 0.0
    %669 = vmatpush2.xpose.msra.mxu0 0.0
    %670 = vmatprep.subr.mxu0 0.0
    %671 = vmatpush2.xpose.msra.mxu0 0.0
    %672 = vmatprep.subr.mxu0 0.0
    %673 = vmatpush2.xpose.msra.mxu0 0.0
    %674 = vmatprep.subr.mxu0 0.0
    %675 = vmatpush2.xpose.msra.mxu0 0.0
    %676 = vmatprep.subr.mxu0 0.0
    %677 = vmatpush2.xpose.msra.mxu0 0.0
    %678 = vmatprep.subr.mxu0 0.0
    %679 = vmatpush2.xpose.msra.mxu0 0.0
    %680 = vmatprep.subr.mxu0 0.0
    %681 = vmatpush2.xpose.msra.mxu0 0.0
    %682 = vmatprep.subr.mxu0 0.0
    %683 = vmatpush2.xpose.msra.mxu0 0.0
    %684 = vmatprep.subr.mxu0 0.0
    %685 = vmatpush2.xpose.msra.mxu0 0.0
    %686 = vmatprep.subr.mxu0 0.0
    %687 = vmatpush2.xpose.msra.mxu0 0.0
    %688 = vmatprep.subr.mxu0 0.0
    %689 = vmatpush2.xpose.msra.mxu0 0.0
    %690 = vmatprep.subr.mxu0 0.0
    %691 = vmatpush2.xpose.msra.mxu0 0.0
    %692 = vmatprep.subr.mxu0 0.0
    %693 = vmatpush2.xpose.msra.mxu0 0.0
    %694 = vmatprep.subr.mxu0 0.0
    %695 = vmatpush2.xpose.msra.mxu0 0.0
    %696 = vmatprep.subr.mxu0 0.0
    %697 = vmatpush2.xpose.msra.mxu0 0.0
    %698 = vmatprep.subr.mxu0 0.0
    %699 = vmatpush2.xpose.msra.mxu0 0.0
    %700 = vmatprep.mubr.f32.mxu0 0.0
    %v701 = vand.u32 %v59, 4294901760
    %702 = vmatmul.mubr.f32.gmra.mxu0 %v701
    %v703 = vpop.f32.mrf.mxu0
    %v704 = vadd.f32 %v628, %v703
    %v705 = vpop.f32.mrf.mxu0
    %706 = vdwg.mxu0
    %707 = vmatprep.subr.mxu0 0.0
    %708 = vmatpush1.xpose.msra.mxu0 0.0
    %709 = vmatprep.subr.mxu0 0.0
    %710 = vmatpush1.xpose.msra.mxu0 0.0
    %711 = vmatprep.subr.mxu0 0.0
    %712 = vmatpush1.xpose.msra.mxu0 0.0
    %713 = vmatprep.subr.mxu0 0.0
    %714 = vmatpush1.xpose.msra.mxu0 0.0
    %715 = vmatprep.subr.mxu0 0.0
    %716 = vmatpush1.xpose.msra.mxu0 0.0
    %717 = vmatprep.subr.mxu0 0.0
    %718 = vmatpush1.xpose.msra.mxu0 0.0
    %719 = vmatprep.subr.mxu0 0.0
    %720 = vmatpush1.xpose.msra.mxu0 0.0
    %721 = vmatprep.subr.mxu0 0.0
    %722 = vmatpush1.xpose.msra.mxu0 0.0
    %723 = vmatprep.subr.mxu0 0.0
    %724 = vmatpush1.xpose.msra.mxu0 0.0
    %725 = vmatprep.subr.mxu0 0.0
    %726 = vmatpush1.xpose.msra.mxu0 0.0
    %727 = vmatprep.subr.mxu0 0.0
    %728 = vmatpush1.xpose.msra.mxu0 0.0
    %729 = vmatprep.subr.mxu0 0.0
    %730 = vmatpush1.xpose.msra.mxu0 0.0
    %731 = vmatprep.subr.mxu0 0.0
    %732 = vmatpush1.xpose.msra.mxu0 0.0
    %733 = vmatprep.subr.mxu0 0.0
    %734 = vmatpush1.xpose.msra.mxu0 0.0
    %735 = vmatprep.subr.mxu0 0.0
    %736 = vmatpush1.xpose.msra.mxu0 0.0
    %737 = vmatprep.subr.mxu0 0.0
    %v738 = vand.u32 %v61, 4294901760
    %v739 = vsub.f32 %v61, %v738
    %740 = vmatpush1.xpose.msra.mxu0 %v739
    %741 = vmatprep.subr.mxu0 0.0
    %742 = vmatpush2.xpose.msra.mxu0 0.0
    %743 = vmatprep.subr.mxu0 0.0
    %744 = vmatpush2.xpose.msra.mxu0 0.0
    %745 = vmatprep.subr.mxu0 0.0
    %746 = vmatpush2.xpose.msra.mxu0 0.0
    %747 = vmatprep.subr.mxu0 0.0
    %748 = vmatpush2.xpose.msra.mxu0 0.0
    %749 = vmatprep.subr.mxu0 0.0
    %750 = vmatpush2.xpose.msra.mxu0 0.0
    %751 = vmatprep.subr.mxu0 0.0
    %752 = vmatpush2.xpose.msra.mxu0 0.0
    %753 = vmatprep.subr.mxu0 0.0
    %754 = vmatpush2.xpose.msra.mxu0 0.0
    %755 = vmatprep.subr.mxu0 0.0
    %756 = vmatpush2.xpose.msra.mxu0 0.0
    %757 = vmatprep.subr.mxu0 0.0
    %758 = vmatpush2.xpose.msra.mxu0 0.0
    %759 = vmatprep.subr.mxu0 0.0
    %760 = vmatpush2.xpose.msra.mxu0 0.0
    %761 = vmatprep.subr.mxu0 0.0
    %762 = vmatpush2.xpose.msra.mxu0 0.0
    %763 = vmatprep.subr.mxu0 0.0
    %764 = vmatpush2.xpose.msra.mxu0 0.0
    %765 = vmatprep.subr.mxu0 0.0
    %766 = vmatpush2.xpose.msra.mxu0 0.0
    %767 = vmatprep.subr.mxu0 0.0
    %768 = vmatpush2.xpose.msra.mxu0 0.0
    %769 = vmatprep.subr.mxu0 0.0
    %770 = vmatpush2.xpose.msra.mxu0 0.0
    %771 = vmatprep.subr.mxu0 0.0
    %772 = vmatpush2.xpose.msra.mxu0 0.0
    %773 = vmatprep.mubr.f32.mxu0 0.0
    %v774 = vand.u32 %v59, 4294901760
    %v775 = vsub.f32 %v59, %v774
    %776 = vmatmul.mubr.f32.gmra.mxu0 %v775
    %v777 = vpop.f32.mrf.mxu0
    %v778 = vadd.f32 %v704, %v777
    %v779 = vpop.f32.mrf.mxu0
    %780 = vdwg.mxu0
    %781 = vmatprep.subr.mxu0 0.0
    %782 = vmatpush1.xpose.msra.mxu0 0.0
    %783 = vmatprep.subr.mxu0 0.0
    %784 = vmatpush1.xpose.msra.mxu0 0.0
    %785 = vmatprep.subr.mxu0 0.0
    %786 = vmatpush1.xpose.msra.mxu0 0.0
    %787 = vmatprep.subr.mxu0 0.0
    %788 = vmatpush1.xpose.msra.mxu0 0.0
    %789 = vmatprep.subr.mxu0 0.0
    %790 = vmatpush1.xpose.msra.mxu0 0.0
    %791 = vmatprep.subr.mxu0 0.0
    %792 = vmatpush1.xpose.msra.mxu0 0.0
    %793 = vmatprep.subr.mxu0 0.0
    %794 = vmatpush1.xpose.msra.mxu0 0.0
    %795 = vmatprep.subr.mxu0 0.0
    %796 = vmatpush1.xpose.msra.mxu0 0.0
    %797 = vmatprep.subr.mxu0 0.0
    %798 = vmatpush1.xpose.msra.mxu0 0.0
    %799 = vmatprep.subr.mxu0 0.0
    %800 = vmatpush1.xpose.msra.mxu0 0.0
    %801 = vmatprep.subr.mxu0 0.0
    %802 = vmatpush1.xpose.msra.mxu0 0.0
    %803 = vmatprep.subr.mxu0 0.0
    %804 = vmatpush1.xpose.msra.mxu0 0.0
    %805 = vmatprep.subr.mxu0 0.0
    %806 = vmatpush1.xpose.msra.mxu0 0.0
    %807 = vmatprep.subr.mxu0 0.0
    %808 = vmatpush1.xpose.msra.mxu0 0.0
    %809 = vmatprep.subr.mxu0 0.0
    %810 = vmatpush1.xpose.msra.mxu0 0.0
    %811 = vmatprep.subr.mxu0 0.0
    %v812 = vand.u32 %v61, 4294901760
    %813 = vmatpush1.xpose.msra.mxu0 %v812
    %814 = vmatprep.subr.mxu0 0.0
    %815 = vmatpush2.xpose.msra.mxu0 0.0
    %816 = vmatprep.subr.mxu0 0.0
    %817 = vmatpush2.xpose.msra.mxu0 0.0
    %818 = vmatprep.subr.mxu0 0.0
    %819 = vmatpush2.xpose.msra.mxu0 0.0
    %820 = vmatprep.subr.mxu0 0.0
    %821 = vmatpush2.xpose.msra.mxu0 0.0
    %822 = vmatprep.subr.mxu0 0.0
    %823 = vmatpush2.xpose.msra.mxu0 0.0
    %824 = vmatprep.subr.mxu0 0.0
    %825 = vmatpush2.xpose.msra.mxu0 0.0
    %826 = vmatprep.subr.mxu0 0.0
    %827 = vmatpush2.xpose.msra.mxu0 0.0
    %828 = vmatprep.subr.mxu0 0.0
    %829 = vmatpush2.xpose.msra.mxu0 0.0
    %830 = vmatprep.subr.mxu0 0.0
    %831 = vmatpush2.xpose.msra.mxu0 0.0
    %832 = vmatprep.subr.mxu0 0.0
    %833 = vmatpush2.xpose.msra.mxu0 0.0
    %834 = vmatprep.subr.mxu0 0.0
    %835 = vmatpush2.xpose.msra.mxu0 0.0
    %836 = vmatprep.subr.mxu0 0.0
    %837 = vmatpush2.xpose.msra.mxu0 0.0
    %838 = vmatprep.subr.mxu0 0.0
    %839 = vmatpush2.xpose.msra.mxu0 0.0
    %840 = vmatprep.subr.mxu0 0.0
    %841 = vmatpush2.xpose.msra.mxu0 0.0
    %842 = vmatprep.subr.mxu0 0.0
    %843 = vmatpush2.xpose.msra.mxu0 0.0
    %844 = vmatprep.subr.mxu0 0.0
    %845 = vmatpush2.xpose.msra.mxu0 0.0
    %846 = vmatprep.mubr.f32.mxu0 0.0
    %v847 = vand.u32 %v59, 4294901760
    %v848 = vsub.f32 %v59, %v847
    %v849 = vand.u32 %v848, 4294901760
    %850 = vmatmul.mubr.f32.gmra.mxu0 %v849
    %v851 = vpop.f32.mrf.mxu0
    %v852 = vadd.f32 %v778, %v851
    %v853 = vpop.f32.mrf.mxu0
    %854 = vdwg.mxu0
    %855 = vmatprep.subr.mxu0 0.0
    %856 = vmatpush1.xpose.msra.mxu0 0.0
    %857 = vmatprep.subr.mxu0 0.0
    %858 = vmatpush1.xpose.msra.mxu0 0.0
    %859 = vmatprep.subr.mxu0 0.0
    %860 = vmatpush1.xpose.msra.mxu0 0.0
    %861 = vmatprep.subr.mxu0 0.0
    %862 = vmatpush1.xpose.msra.mxu0 0.0
    %863 = vmatprep.subr.mxu0 0.0
    %864 = vmatpush1.xpose.msra.mxu0 0.0
    %865 = vmatprep.subr.mxu0 0.0
    %866 = vmatpush1.xpose.msra.mxu0 0.0
    %867 = vmatprep.subr.mxu0 0.0
    %868 = vmatpush1.xpose.msra.mxu0 0.0
    %869 = vmatprep.subr.mxu0 0.0
    %870 = vmatpush1.xpose.msra.mxu0 0.0
    %871 = vmatprep.subr.mxu0 0.0
    %872 = vmatpush1.xpose.msra.mxu0 0.0
    %873 = vmatprep.subr.mxu0 0.0
    %874 = vmatpush1.xpose.msra.mxu0 0.0
    %875 = vmatprep.subr.mxu0 0.0
    %876 = vmatpush1.xpose.msra.mxu0 0.0
    %877 = vmatprep.subr.mxu0 0.0
    %878 = vmatpush1.xpose.msra.mxu0 0.0
    %879 = vmatprep.subr.mxu0 0.0
    %880 = vmatpush1.xpose.msra.mxu0 0.0
    %881 = vmatprep.subr.mxu0 0.0
    %882 = vmatpush1.xpose.msra.mxu0 0.0
    %883 = vmatprep.subr.mxu0 0.0
    %884 = vmatpush1.xpose.msra.mxu0 0.0
    %885 = vmatprep.subr.mxu0 0.0
    %v886 = vand.u32 %v61, 4294901760
    %v887 = vsub.f32 %v61, %v886
    %v888 = vand.u32 %v887, 4294901760
    %889 = vmatpush1.xpose.msra.mxu0 %v888
    %890 = vmatprep.subr.mxu0 0.0
    %891 = vmatpush2.xpose.msra.mxu0 0.0
    %892 = vmatprep.subr.mxu0 0.0
    %893 = vmatpush2.xpose.msra.mxu0 0.0
    %894 = vmatprep.subr.mxu0 0.0
    %895 = vmatpush2.xpose.msra.mxu0 0.0
    %896 = vmatprep.subr.mxu0 0.0
    %897 = vmatpush2.xpose.msra.mxu0 0.0
    %898 = vmatprep.subr.mxu0 0.0
    %899 = vmatpush2.xpose.msra.mxu0 0.0
    %900 = vmatprep.subr.mxu0 0.0
    %901 = vmatpush2.xpose.msra.mxu0 0.0
    %902 = vmatprep.subr.mxu0 0.0
    %903 = vmatpush2.xpose.msra.mxu0 0.0
    %904 = vmatprep.subr.mxu0 0.0
    %905 = vmatpush2.xpose.msra.mxu0 0.0
    %906 = vmatprep.subr.mxu0 0.0
    %907 = vmatpush2.xpose.msra.mxu0 0.0
    %908 = vmatprep.subr.mxu0 0.0
    %909 = vmatpush2.xpose.msra.mxu0 0.0
    %910 = vmatprep.subr.mxu0 0.0
    %911 = vmatpush2.xpose.msra.mxu0 0.0
    %912 = vmatprep.subr.mxu0 0.0
    %913 = vmatpush2.xpose.msra.mxu0 0.0
    %914 = vmatprep.subr.mxu0 0.0
    %915 = vmatpush2.xpose.msra.mxu0 0.0
    %916 = vmatprep.subr.mxu0 0.0
    %917 = vmatpush2.xpose.msra.mxu0 0.0
    %918 = vmatprep.subr.mxu0 0.0
    %919 = vmatpush2.xpose.msra.mxu0 0.0
    %920 = vmatprep.subr.mxu0 0.0
    %921 = vmatpush2.xpose.msra.mxu0 0.0
    %922 = vmatprep.mubr.f32.mxu0 0.0
    %v923 = vand.u32 %v59, 4294901760
    %924 = vmatmul.mubr.f32.gmra.mxu0 %v923
    %v925 = vpop.f32.mrf.mxu0
    %v926 = vadd.f32 %v852, %v925
    %v927 = vpop.f32.mrf.mxu0
    %928 = vdwg.mxu0
    %929 = vmatprep.subr.mxu0 0.0
    %930 = vmatpush1.xpose.msra.mxu0 0.0
    %931 = vmatprep.subr.mxu0 0.0
    %932 = vmatpush1.xpose.msra.mxu0 0.0
    %933 = vmatprep.subr.mxu0 0.0
    %934 = vmatpush1.xpose.msra.mxu0 0.0
    %935 = vmatprep.subr.mxu0 0.0
    %936 = vmatpush1.xpose.msra.mxu0 0.0
    %937 = vmatprep.subr.mxu0 0.0
    %938 = vmatpush1.xpose.msra.mxu0 0.0
    %939 = vmatprep.subr.mxu0 0.0
    %940 = vmatpush1.xpose.msra.mxu0 0.0
    %941 = vmatprep.subr.mxu0 0.0
    %942 = vmatpush1.xpose.msra.mxu0 0.0
    %943 = vmatprep.subr.mxu0 0.0
    %944 = vmatpush1.xpose.msra.mxu0 0.0
    %945 = vmatprep.subr.mxu0 0.0
    %946 = vmatpush1.xpose.msra.mxu0 0.0
    %947 = vmatprep.subr.mxu0 0.0
    %948 = vmatpush1.xpose.msra.mxu0 0.0
    %949 = vmatprep.subr.mxu0 0.0
    %950 = vmatpush1.xpose.msra.mxu0 0.0
    %951 = vmatprep.subr.mxu0 0.0
    %952 = vmatpush1.xpose.msra.mxu0 0.0
    %953 = vmatprep.subr.mxu0 0.0
    %954 = vmatpush1.xpose.msra.mxu0 0.0
    %955 = vmatprep.subr.mxu0 0.0
    %956 = vmatpush1.xpose.msra.mxu0 0.0
    %957 = vmatprep.subr.mxu0 0.0
    %958 = vmatpush1.xpose.msra.mxu0 0.0
    %959 = vmatprep.subr.mxu0 0.0
    %v960 = vand.u32 %v61, 4294901760
    %961 = vmatpush1.xpose.msra.mxu0 %v960
    %962 = vmatprep.subr.mxu0 0.0
    %963 = vmatpush2.xpose.msra.mxu0 0.0
    %964 = vmatprep.subr.mxu0 0.0
    %965 = vmatpush2.xpose.msra.mxu0 0.0
    %966 = vmatprep.subr.mxu0 0.0
    %967 = vmatpush2.xpose.msra.mxu0 0.0
    %968 = vmatprep.subr.mxu0 0.0
    %969 = vmatpush2.xpose.msra.mxu0 0.0
    %970 = vmatprep.subr.mxu0 0.0
    %971 = vmatpush2.xpose.msra.mxu0 0.0
    %972 = vmatprep.subr.mxu0 0.0
    %973 = vmatpush2.xpose.msra.mxu0 0.0
    %974 = vmatprep.subr.mxu0 0.0
    %975 = vmatpush2.xpose.msra.mxu0 0.0
    %976 = vmatprep.subr.mxu0 0.0
    %977 = vmatpush2.xpose.msra.mxu0 0.0
    %978 = vmatprep.subr.mxu0 0.0
    %979 = vmatpush2.xpose.msra.mxu0 0.0
    %980 = vmatprep.subr.mxu0 0.0
    %981 = vmatpush2.xpose.msra.mxu0 0.0
    %982 = vmatprep.subr.mxu0 0.0
    %983 = vmatpush2.xpose.msra.mxu0 0.0
    %984 = vmatprep.subr.mxu0 0.0
    %985 = vmatpush2.xpose.msra.mxu0 0.0
    %986 = vmatprep.subr.mxu0 0.0
    %987 = vmatpush2.xpose.msra.mxu0 0.0
    %988 = vmatprep.subr.mxu0 0.0
    %989 = vmatpush2.xpose.msra.mxu0 0.0
    %990 = vmatprep.subr.mxu0 0.0
    %991 = vmatpush2.xpose.msra.mxu0 0.0
    %992 = vmatprep.subr.mxu0 0.0
    %993 = vmatpush2.xpose.msra.mxu0 0.0
    %994 = vmatprep.mubr.f32.mxu0 0.0
    %v995 = vand.u32 %v59, 4294901760
    %996 = vmatmul.mubr.f32.gmra.mxu0 %v995
    %v997 = vpop.f32.mrf.mxu0
    %v998 = vadd.f32 %v926, %v997
    %v999 = vpop.f32.mrf.mxu0
    %1000 = vdwg.mxu0
    %v1001 = vmul.f32 %v61, %v61
    %vm1002 = vcmask 1041408
    %v1003 = vsel %vm1002, %v1001, 0.0
    %1004 = vadd.xlane.f32.xlu0 %v1003
    %v1005 = vpop.xlane.xlu0 %1004
    %v1006 = vlaneseq
    %v1007 = vshrl.u32 %v1006, 7
    %v1008 = vsub.s32 0, %v1007
    %v1009 = vrot.slane %v1005, %v1008
    %v1010 = vmul.f32 %v87, %v1009
    %v1011 = vlaneseq
    %v1012 = vshrl.u32 %v1011, 7
    %v1013 = vsub.s32 1, %v1012
    %v1014 = vrot.slane %v1005, %v1013
    %v1015 = vmul.f32 %v68, %v1014
    %v1016 = vadd.f32 %v1010, %v1015
    %v1017 = vmul.f32 %v87, %v552
    %1019 = vrot.lane.b32.xlu0 %v552, 127
    %v1020 = vpop.permute.xlu0 %1019
    %v1022 = vmul.f32 %v68, %v1020
    %v1023 = vadd.f32 %v1017, %v1022
    %v1024 = vmul.f32 %v87, %v998
    %1026 = vrot.lane.b32.xlu0 %v998, 127
    %v1027 = vpop.permute.xlu0 %1026
    %v1029 = vmul.f32 %v68, %v1027
    %v1030 = vadd.f32 %v1024, %v1029
    %v1031 = vmul.f32 %v1023, 2.0
    %v1032 = vsub.f32 %v71, %v1031
    %v1033 = vadd.f32 %v1032, %v1016
    %v1034 = vmul.f32 %v1030, 2.0
    %v1035 = vsub.f32 %v74, %v1034
    %v1036 = vadd.f32 %v1035, %v1016
    %v1037 = vadd.f32 %v1033, %v1036
    %s1038 = sld [smem:[#allocation2 + $0x1]]
    %v1039 = vsel %vm67, %v1037, 0.0
    %v1040 = vsel %vm95, %v1039, 0.0
    %1041 = vadd.xlane.f32.xlu0 %v1040
    %v1042 = vpop.xlane.xlu0 %1041
    %v1043 = vrot.slane %v1042, 4
    %v1044 = vadd.f32 %v1042, %v1043
    %v1045 = vrot.slane %v1044, 2
    %v1046 = vadd.f32 %v1044, %v1045
    %v1047 = vrot.slane %v1046, 1
    %v1048 = vadd.f32 %v1046, %v1047
    %s1049 = vtos %v1048
    %s1050 = sadd.f32 %s1038, %s1049
    %s1051 = scalar_lea.smem [#allocation2], 1
    %1052 = sst [smem:[%s1051]] %s1050
    %v1053 = vld [vmem:[#allocation6] sm:$0xff]
    %v1054 = vld [vmem:[%s4] sm:$0xff]
    %v1055 = vsub.f32 %v1053, %v58
    %v1056 = vmul.f32 %v1055, %v1055
    %1057 = vadd.xlane.f32.xlu0 %v1056
    %v1058 = vpop.xlane.xlu0 %1057
    %v1059 = vsub.f32 %v1053, %v1054
    %v1060 = vmul.f32 %v1059, %v1059
    %1061 = vadd.xlane.f32.xlu0 %v1060
    %v1062 = vpop.xlane.xlu0 %1061
    %v1063 = vsub.f32 %v1058, %v1062
    %v1064 = vadd.f32 %v1063, 0.5
    %v1065 = vmax.f32 %v1064, 0.0
    %s1066 = sld [smem:[#allocation2 + $0x2]]
    %v1067 = vsel %vm67, %v1065, 0.0
    %v1068 = vsel %vm95, %v1067, 0.0
    %1069 = vadd.xlane.f32.xlu0 %v1068
    %v1070 = vpop.xlane.xlu0 %1069
    %v1071 = vrot.slane %v1070, 4
    %v1072 = vadd.f32 %v1070, %v1071
    %v1073 = vrot.slane %v1072, 2
    %v1074 = vadd.f32 %v1072, %v1073
    %v1075 = vrot.slane %v1074, 1
    %v1076 = vadd.f32 %v1074, %v1075
    %s1077 = vtos %v1076
    %s1078 = sadd.f32 %s1066, %s1077
    %s1079 = scalar_lea.smem [#allocation2], 2
    %1080 = sst [smem:[%s1079]] %s1078
    // Predicated region
    $region38: #{tpu_custom_call.1} parent=1 // pred_check
      %p1081 = pneg %p48
    $region39: #{tpu_custom_call.1} parent=1 // pred_check_branch
      %1083 = sbr.rel (%p1081) target = $region41
    $region40: #{tpu_custom_call.1} parent=1 // pred_region
      %s1084 = sld [smem:[#allocation2]]
      %s1085 = smul.f32 %s1084, 0.125
      %s1086 = sld [smem:[#allocation2 + $0x1]]
      %s1087 = smul.f32 %s1086, 0.125
      %s1088 = smul.f32 %s1087, 0.1
      %s1089 = scalar_lea.smem [#allocation8], 0
      %1090 = sst [smem:[%s1089]] %s1085
      %s1091 = scalar_lea.smem [#allocation8], 1
      %1092 = sst [smem:[%s1091]] %s1088
      %s1093 = sld [smem:[#allocation2 + $0x2]]
      %s1094 = smul.f32 %s1093, 0.125
      %s1095 = smul.f32 %s1094, 0.3
      %s1096 = scalar_lea.smem [#allocation8], 2
      %1097 = sst [smem:[%s1096]] %s1095
      %s1098 = sadd.f32 %s1085, %s1088
      %s1099 = sadd.f32 %s1098, %s1095
      %s1100 = scalar_lea.smem [#allocation8], 3
      %1101 = sst [smem:[%s1100]] %s1099
    $region41: #{tpu_custom_call.1} parent=1 // pred_fallthru
      _
    // Predicated region
    $region42: #{tpu_custom_call.1} parent=1 // pred_check
      _
    $region43: #{tpu_custom_call.1} parent=1 // pred_check_branch
      %1103 = sbr.rel (0) target = $region45
    $region44: #{tpu_custom_call.1} parent=1 // pred_region
      %s1105 = ssub.s32 16, 16
      %1106 = vsyncadd [#allocation5], %s1105
      %1109 = dma.smem_to_hbm [#allocation8], 16, %s6, [#allocation5]
    $region45: #{tpu_custom_call.1} parent=1 // pred_fallthru
      _
    // Predicated region
    $region46: #{tpu_custom_call.1} parent=1 // pred_check
      _
    $region47: #{tpu_custom_call.1} parent=1 // pred_check_branch
      %1111 = sbr.rel (0) target = $region49
    $region48: #{tpu_custom_call.1} parent=1 // pred_region
      %1112 = dma.done [#allocation5], 16
    $region49: #{tpu_custom_call.1} parent=1 // pred_fallthru
      _
    %1113 = sfence
    %1114 = vsyncpa [#allocation4], 1
    %1115 = vsyncpa [#allocation7], 1
    %1116 = vsyncpa [#allocation5], 1

</llo_original>
